<compile_context>
chip_gen: v5e
topology: v5e:2x2
jax: 0.10.0
libtpu: 0.0.40
codegen_flags: <defaults>
</compile_context>

<pallas_src>
import functools

import numpy as np
import jax
import jax.numpy as jnp
from jax.experimental import pallas as pl
from jax.experimental.pallas import tpu as pltpu

# ----------------------------- configuration --------------------------------
SR, N_FFT, WIN, HOP, N_MELS = 16000, 400, 400, 160, 80
N_FREQ = N_FFT // 2 + 1          # 201
NFFT_PAD, NFREQ_PAD = 512, 256   # lane-friendly zero-padded sizes
MEL_PAD = 128                    # lane-dense mel output (slice 80 in wrapper)
FRAME_TILE = 128
ECAPA_CH = 1024                  # speechbrain ECAPA default channels
RES2_SCALE = 8
SE_CH = 128
ATT_CH = 128
LIN_NEURONS = 192
N_CLASSES = 921
AMM_S, AMM_M = 30.0, 0.2

VMEM_LIMIT = 32 * 1024 * 1024    # explicit scoped-VMEM budget (v7x-safe)


def _round_up(v, m):
    return ((v + m - 1) // m) * m


def _pad2(x, m0, m1):
    p0 = _round_up(x.shape[0], m0) - x.shape[0]
    p1 = _round_up(x.shape[1], m1) - x.shape[1]
    if p0 or p1:
        x = jnp.pad(x, ((0, p0), (0, p1)))
    return x


# ============================ Pallas kernels =================================
def _mm_kernel(a_ref, b_ref, bias_ref, o_ref, acc_ref, *, activation):
    """Tiled bf16 matmul, f32 accumulator, fused bias + activation epilogue."""
    @pl.when(pl.program_id(2) == 0)
    def _():
        acc_ref[...] = jnp.zeros_like(acc_ref)

    acc_ref[...] += jnp.dot(a_ref[...], b_ref[...],
                            preferred_element_type=jnp.float32)

    @pl.when(pl.program_id(2) == pl.num_programs(2) - 1)
    def _():
        r = acc_ref[...] + bias_ref[...]
        if activation == 'relu':
            r = jnp.maximum(r, 0.0)
        elif activation == 'sigmoid':
            r = jax.nn.sigmoid(r)
        elif activation == 'tanh':
            r = jnp.tanh(r)
        o_ref[...] = r.astype(o_ref.dtype)


@functools.partial(jax.jit, static_argnames=('activation', 'out_dtype', 'keep_f32'))
def matmul_bias_act(a, b, bias, *, activation='none', out_dtype=jnp.float32,
                    keep_f32=False):
    """out = act(a @ b + bias); a:(M,K) b:(K,N) bias:(N,).  bf16 MXU feed."""
    M, K = a.shape
    N = b.shape[1]
    if M >= 256:
        tm = 256
    elif M > 128:
        tm = 128
    else:
        tm = _round_up(max(M, 1), 8)
    tn = min(256, _round_up(N, 128))
    tk = min(512, _round_up(K, 128))
    in_dt = jnp.float32 if keep_f32 else jnp.bfloat16
    ap = _pad2(a.astype(in_dt), tm, tk)
    bp = _pad2(b.astype(in_dt), tk, tn)
    biasp = _pad2(bias.reshape(1, -1).astype(jnp.float32), 1, tn)
    Mp, Kp = ap.shape
    Np = bp.shape[1]
    out = pl.pallas_call(
        functools.partial(_mm_kernel, activation=activation),
        out_shape=jax.ShapeDtypeStruct((Mp, Np), out_dtype),
        grid_spec=pltpu.PrefetchScalarGridSpec(
            num_scalar_prefetch=0,
            grid=(Mp // tm, Np // tn, Kp // tk),
            in_specs=[pl.BlockSpec((tm, tk), lambda i, j, k: (i, k)),
                      pl.BlockSpec((tk, tn), lambda i, j, k: (k, j)),
                      pl.BlockSpec((1, tn), lambda i, j, k: (0, j))],
            out_specs=pl.BlockSpec((tm, tn), lambda i, j, k: (i, j)),
            scratch_shapes=[pltpu.VMEM((tm, tn), jnp.float32)]),
        compiler_params=pltpu.CompilerParams(
            dimension_semantics=("parallel", "parallel", "arbitrary"),
            vmem_limit_bytes=VMEM_LIMIT),
    )(ap, bp, biasp)
    return out[:M, :N]


def _bn_kernel(x_ref, g_ref, b_ref, o_ref, *, activation):
    # torch training-mode BatchNorm1d: batch statistics, biased variance.
    # Columns are independent -> tiled over channels; stats in f32.
    x = x_ref[...].astype(jnp.float32)
    mean = jnp.mean(x, axis=0, keepdims=True)
    var = jnp.mean((x - mean) ** 2, axis=0, keepdims=True)
    y = (x - mean) * jax.lax.rsqrt(var + 1e-5) * g_ref[...] + b_ref[...]
    if activation == 'tanh':
        y = jnp.tanh(y)
    o_ref[...] = y


@functools.partial(jax.jit, static_argnames=('activation',))
def batchnorm(x, g, b, *, activation='none'):
    shp = x.shape
    C = shp[-1]
    x2 = x.reshape(-1, C)
    R = x2.shape[0]
    tc = 256 if C % 256 == 0 else (128 if C % 128 == 0 else C)
    out = pl.pallas_call(
        functools.partial(_bn_kernel, activation=activation),
        out_shape=jax.ShapeDtypeStruct((R, C), jnp.float32),
        grid=(C // tc,),
        in_specs=[pl.BlockSpec((R, tc), lambda c: (0, c)),
                  pl.BlockSpec((1, tc), lambda c: (0, c)),
                  pl.BlockSpec((1, tc), lambda c: (0, c))],
        out_specs=pl.BlockSpec((R, tc), lambda c: (0, c)),
        compiler_params=pltpu.CompilerParams(
            dimension_semantics=("parallel",),
            vmem_limit_bytes=VMEM_LIMIT),
    )(x2, g.reshape(1, C), b.reshape(1, C))
    return out.reshape(shp)


def _sentnorm_kernel(x_ref, o_ref):
    # InputNormalization(norm_type='sentence', std_norm=False).
    x = x_ref[...]
    o_ref[...] = x - jnp.mean(x, axis=1, keepdims=True)


@jax.jit
def sentence_norm(x):
    B, T, F = x.shape
    return pl.pallas_call(
        _sentnorm_kernel,
        out_shape=jax.ShapeDtypeStruct(x.shape, jnp.float32),
        grid=(B,),
        in_specs=[pl.BlockSpec((1, T, F), lambda b: (b, 0, 0))],
        out_specs=pl.BlockSpec((1, T, F), lambda b: (b, 0, 0)),
        compiler_params=pltpu.CompilerParams(
            dimension_semantics=("parallel",)),
    )(x)


def _time_mean_kernel(x_ref, o_ref):
    o_ref[...] = jnp.mean(x_ref[...].astype(jnp.float32), axis=1, keepdims=True)


@jax.jit
def time_mean(x):
    B, T, C = x.shape
    tc = 256 if C % 256 == 0 else C
    return pl.pallas_call(
        _time_mean_kernel,
        out_shape=jax.ShapeDtypeStruct((B, 1, C), jnp.float32),
        grid=(B, C // tc),
        in_specs=[pl.BlockSpec((1, T, tc), lambda b, c: (b, 0, c))],
        out_specs=pl.BlockSpec((1, 1, tc), lambda b, c: (b, 0, c)),
        compiler_params=pltpu.CompilerParams(
            dimension_semantics=("parallel", "parallel"),
            vmem_limit_bytes=VMEM_LIMIT),
    )(x)


def _time_stats_kernel(x_ref, m_ref, s_ref):
    # Unweighted mean / biased std over time (ASP global context).
    x = x_ref[...].astype(jnp.float32)
    mean = jnp.mean(x, axis=1, keepdims=True)
    var = jnp.mean((x - mean) ** 2, axis=1, keepdims=True)
    m_ref[...] = mean
    s_ref[...] = jnp.sqrt(jnp.maximum(var, 1e-12))


@jax.jit
def time_stats(x):
    B, T, C = x.shape
    tc = 256 if C % 256 == 0 else C
    return pl.pallas_call(
        _time_stats_kernel,
        out_shape=(jax.ShapeDtypeStruct((B, 1, C), jnp.float32),
                   jax.ShapeDtypeStruct((B, 1, C), jnp.float32)),
        grid=(B, C // tc),
        in_specs=[pl.BlockSpec((1, T, tc), lambda b, c: (b, 0, c))],
        out_specs=(pl.BlockSpec((1, 1, tc), lambda b, c: (b, 0, c)),
                   pl.BlockSpec((1, 1, tc), lambda b, c: (b, 0, c))),
        compiler_params=pltpu.CompilerParams(
            dimension_semantics=("parallel", "parallel"),
            vmem_limit_bytes=VMEM_LIMIT),
    )(x)


def _attn_pool_kernel(a_ref, h_ref, m_ref, s_ref):
    # Fused softmax-over-time + weighted mean/std (AttentiveStatisticsPooling).
    a = a_ref[...]
    h = h_ref[...].astype(jnp.float32)
    amax = jnp.max(a, axis=1, keepdims=True)
    e = jnp.exp(a - amax)
    w = e / jnp.sum(e, axis=1, keepdims=True)
    mean = jnp.sum(w * h, axis=1, keepdims=True)
    var = jnp.sum(w * (h - mean) ** 2, axis=1, keepdims=True)
    m_ref[...] = mean
    s_ref[...] = jnp.sqrt(jnp.maximum(var, 1e-12))


@jax.jit
def attn_pool(a, h):
    B, T, C = h.shape
    tc = 256 if C % 256 == 0 else C
    return pl.pallas_call(
        _attn_pool_kernel,
        out_shape=(jax.ShapeDtypeStruct((B, 1, C), jnp.float32),
                   jax.ShapeDtypeStruct((B, 1, C), jnp.float32)),
        grid=(B, C // tc),
        in_specs=[pl.BlockSpec((1, T, tc), lambda b, c: (b, 0, c)),
                  pl.BlockSpec((1, T, tc), lambda b, c: (b, 0, c))],
        out_specs=(pl.BlockSpec((1, 1, tc), lambda b, c: (b, 0, c)),
                   pl.BlockSpec((1, 1, tc), lambda b, c: (b, 0, c))),
        compiler_params=pltpu.CompilerParams(
            dimension_semantics=("parallel", "parallel"),
            vmem_limit_bytes=VMEM_LIMIT),
    )(a, h)


def _scale_add_kernel(x_ref, s_ref, r_ref, o_ref):
    # SE re-scaling fused with the SERes2Net residual add: s * x + residual.
    o_ref[...] = x_ref[...] * s_ref[...] + r_ref[...]


@jax.jit
def scale_add(x, s, r):
    B, T, C = x.shape
    tc = 256 if C % 256 == 0 else C
    return pl.pallas_call(
        _scale_add_kernel,
        out_shape=jax.ShapeDtypeStruct(x.shape, jnp.float32),
        grid=(B, C // tc),
        in_specs=[pl.BlockSpec((1, T, tc), lambda b, c: (b, 0, c)),
                  pl.BlockSpec((1, 1, tc), lambda b, c: (b, 0, c)),
                  pl.BlockSpec((1, T, tc), lambda b, c: (b, 0, c))],
        out_specs=pl.BlockSpec((1, T, tc), lambda b, c: (b, 0, c)),
        compiler_params=pltpu.CompilerParams(
            dimension_semantics=("parallel", "parallel"),
            vmem_limit_bytes=VMEM_LIMIT),
    )(x, s, r)


def _add_bias_relu_kernel(x_ref, b_ref, o_ref):
    o_ref[...] = jnp.maximum(x_ref[...].astype(jnp.float32) + b_ref[...], 0.0)


@jax.jit
def add_rowbias_relu(x, b):
    # x: (B, T, C) time-varying term, b: (B, 1, C) per-utterance term.
    B, T, C = x.shape
    return pl.pallas_call(
        _add_bias_relu_kernel,
        out_shape=jax.ShapeDtypeStruct((B, T, C), jnp.float32),
        grid=(B,),
        in_specs=[pl.BlockSpec((1, T, C), lambda i: (i, 0, 0)),
                  pl.BlockSpec((1, 1, C), lambda i: (i, 0, 0))],
        out_specs=pl.BlockSpec((1, T, C), lambda i: (i, 0, 0)),
        compiler_params=pltpu.CompilerParams(
            dimension_semantics=("parallel",)),
    )(x, b)


def _fbank_kernel(fr_ref, wc_ref, ws_ref, mel_ref, o_ref):
    # frames @ (window*DFT) -> power spectrum -> mel matmul -> 10*log10.
    f = fr_ref[...]
    re = jnp.dot(f, wc_ref[...], preferred_element_type=jnp.float32)
    im = jnp.dot(f, ws_ref[...], preferred_element_type=jnp.float32)
    p = re * re + im * im
    m = jnp.dot(p, mel_ref[...], preferred_element_type=jnp.float32)
    o_ref[...] = 10.0 * jnp.log10(jnp.maximum(m, 1e-10))   # amin=1e-10, ref=1


@jax.jit
def fbank(x, wc, ws, melfb):
    """x: (B, L) waveform -> (B, T, 80) log-mel features (Fbank(n_mels=80))."""
    B, L = x.shape
    T = 1 + (L - WIN) // HOP
    # TODO(synk): speechbrain STFT uses center padding; frames here are left-aligned.
    idx = jnp.arange(T)[:, None] * HOP + jnp.arange(WIN)[None, :]
    frames = x[:, idx].reshape(B * T, WIN).astype(jnp.float32)
    frames = jnp.pad(frames, ((0, (-B * T) % FRAME_TILE), (0, NFFT_PAD - WIN)))
    Mp = frames.shape[0]
    out = pl.pallas_call(
        _fbank_kernel,
        out_shape=jax.ShapeDtypeStruct((Mp, MEL_PAD), jnp.float32),
        grid=(Mp // FRAME_TILE,),
        in_specs=[pl.BlockSpec((FRAME_TILE, NFFT_PAD), lambda i: (i, 0)),
                  pl.BlockSpec((NFFT_PAD, NFREQ_PAD), lambda i: (0, 0)),
                  pl.BlockSpec((NFFT_PAD, NFREQ_PAD), lambda i: (0, 0)),
                  pl.BlockSpec((NFREQ_PAD, MEL_PAD), lambda i: (0, 0))],
        out_specs=pl.BlockSpec((FRAME_TILE, MEL_PAD), lambda i: (i, 0)),
        compiler_params=pltpu.CompilerParams(
            dimension_semantics=("parallel",),
            vmem_limit_bytes=VMEM_LIMIT),
    )(frames, wc, ws, melfb)
    mel = out[:B * T, :N_MELS].reshape(B, T, N_MELS)
    # top_db=80 clamp per batch element (speechbrain amplitude_to_DB).
    mel = jnp.maximum(mel, jnp.max(mel, axis=(1, 2), keepdims=True) - 80.0)
    return mel


def _amm_kernel(cos_ref, oh_ref, o_ref, *, s, m):
    # Additive-margin softmax loss on precomputed cosine logits (f32).
    cos = cos_ref[...]
    oh = oh_ref[...]
    cos_y = jnp.sum(oh * cos, axis=1, keepdims=True)
    num = s * (cos_y - m)
    excl = jnp.sum(jnp.exp(s * cos) * (1.0 - oh), axis=1, keepdims=True)
    L = num - jnp.log(jnp.exp(num) + excl)
    o_ref[...] = (-jnp.mean(L)) * jnp.ones((1, 1), jnp.float32)


@jax.jit
def amm_loss(emb, labels, W):
    x = emb / jnp.maximum(jnp.linalg.norm(emb, axis=1, keepdims=True), 1e-12)
    Wn = W / jnp.maximum(jnp.linalg.norm(W, axis=1, keepdims=True), 1e-12)
    # Cosine logits kept in f32 (review: avoid bf16 drift in exp(s*cos)).
    cos = matmul_bias_act(x, Wn.T, jnp.zeros((W.shape[0],), jnp.float32),
                          keep_f32=True)                     # (B, n_classes)
    oh = jax.nn.one_hot(labels, W.shape[0], dtype=jnp.float32)
    loss = pl.pallas_call(
        functools.partial(_amm_kernel, s=AMM_S, m=AMM_M),
        out_shape=jax.ShapeDtypeStruct((1, 1), jnp.float32),
        grid=(1,),
        in_specs=[pl.BlockSpec(cos.shape, lambda i: (0, 0)),
                  pl.BlockSpec(cos.shape, lambda i: (0, 0))],
        out_specs=pl.BlockSpec((1, 1), lambda i: (0, 0)),
    )(cos, oh)
    return loss[0, 0]


# ============================== model glue ===================================
def conv1d(x, w, b, *, dilation=1, activation='none', out_dtype=jnp.float32):
    """SpeechBrain Conv1d ('same', reflect pad) via im2col + Pallas matmul.
    x: (B, T, Cin), w: (K, Cin, Cout), b: (Cout,)."""
    B, T, Cin = x.shape
    K, _, Cout = w.shape
    if K > 1:
        pad = (K - 1) * dilation // 2
        xp = jnp.pad(x, ((0, 0), (pad, pad), (0, 0)), mode='reflect')
        # TODO(synk): im2col duplicates activation traffic Kx; a halo-read
        # K-tap accumulating matmul kernel would avoid this (only K=3/5 paths).
        cols = jnp.concatenate(
            [xp[:, k * dilation:k * dilation + T, :] for k in range(K)], axis=-1)
    else:
        cols = x
    out = matmul_bias_act(cols.reshape(B * T, K * Cin), w.reshape(K * Cin, Cout),
                          b, activation=activation, out_dtype=out_dtype)
    return out.reshape(B, T, Cout)


def tdnn_block(x, p, *, dilation=1, post_act='none'):
    # SpeechBrain TDNNBlock = Conv1d -> ReLU -> BatchNorm1d.
    # Conv output written bf16 (halves writeback); BN stats computed in f32.
    h = conv1d(x, p['conv']['w'], p['conv']['b'], dilation=dilation,
               activation='relu', out_dtype=jnp.bfloat16)
    return batchnorm(h, p['bn']['g'], p['bn']['b'], activation=post_act)


def se_res2net_block(x, p):
    residual = x
    h = tdnn_block(x, p['tdnn1'])                                   # k=1
    # Res2Net (scale=8): hierarchical 3x dilated convs on 128-ch chunks.
    cw = ECAPA_CH // RES2_SCALE
    chunks = [h[:, :, i * cw:(i + 1) * cw] for i in range(RES2_SCALE)]
    ys = [chunks[0]]
    for i in range(1, RES2_SCALE):
        inp = chunks[i] if i == 1 else chunks[i] + ys[-1]
        ys.append(tdnn_block(inp, p['res2'][i - 1], dilation=p['dilation']))
    h = jnp.concatenate(ys, axis=-1)
    h = tdnn_block(h, p['tdnn2'])                                   # k=1
    # SE block (lengths=None -> plain time mean); sigmoid fused in se2 matmul.
    s = time_mean(h)
    s = conv1d(s, p['se1']['w'], p['se1']['b'], activation='relu')
    s = conv1d(s, p['se2']['w'], p['se2']['b'], activation='sigmoid')
    return scale_add(h, s, residual)


def ecapa_forward(x, P):
    """ECAPA_TDNN(80, lin_neurons=192) forward -> (B, 1, 192) embedding."""
    h = tdnn_block(x, P['block1'])                     # k=5, d=1
    feats = []
    for blk in P['se_blocks']:                         # d = 2, 3, 4
        h = se_res2net_block(h, blk)
        feats.append(h)
    h = jnp.concatenate(feats, axis=-1)                # (B, T, 3072)
    h = tdnn_block(h, P['mfa'])                        # MFA, k=1
    B, T, C = h.shape

    # Attentive statistics pooling (global_context=True, lengths=None).
    # The (B,T,3C) context is NOT materialized: the K=3C conv weight is split
    # into a time-varying h@Wh part and a per-utterance [gmean|gstd]@Wms part.
    gmean, gstd = time_stats(h)                                      # (B,1,C) x2
    w_asp = P['asp_tdnn']['conv']['w'].reshape(3 * C, ATT_CH)
    Wh, Wms = w_asp[:C], w_asp[C:]
    gvec = jnp.concatenate([gmean, gstd], axis=-1).reshape(B, 2 * C)
    gterm = matmul_bias_act(gvec, Wms, P['asp_tdnn']['conv']['b'])   # (B, 128)
    hterm = matmul_bias_act(h.reshape(B * T, C), Wh,
                            jnp.zeros((ATT_CH,), jnp.float32))       # (B*T, 128)
    a = add_rowbias_relu(hterm.reshape(B, T, ATT_CH),
                         gterm.reshape(B, 1, ATT_CH))
    a = batchnorm(a, P['asp_tdnn']['bn']['g'], P['asp_tdnn']['bn']['b'],
                  activation='tanh')                                 # (B, T, 128)
    a = conv1d(a, P['asp_conv']['w'], P['asp_conv']['b'])            # (B, T, C) logits
    pmean, pstd = attn_pool(a, h)                                    # fused softmax+stats
    pooled = jnp.concatenate([pmean, pstd], axis=-1).reshape(B, 2 * C)
    pooled = batchnorm(pooled, P['asp_bn']['g'], P['asp_bn']['b'])
    emb = conv1d(pooled.reshape(B, 1, 2 * C), P['fc']['w'], P['fc']['b'])
    return emb                                         # (B, 1, 192)


def semi_informed_reverser_forward(x, y, P, fb_consts, embeddings=False):
    """x: (B, L) waveforms.  Returns scalar AM-Softmax loss (or (B,192) embeddings)."""
    mel = fbank(x, *fb_consts)              # Fbank(n_mels=80)
    mel_norm = sentence_norm(mel)           # InputNormalization('sentence', std_norm=False)
    emb = ecapa_forward(mel_norm, P)        # xv_model(mel_norm) -> (B, 1, 192)
    # TODO(synk): the ECAPA wrapper's second output (out_neurons=5994 classifier
    # head) is discarded by the module's forward and is not computed here.
    xv = emb.reshape(emb.shape[0], -1)      # .squeeze(dim=1)
    if embeddings:
        return xv
    return amm_loss(xv, y, P['amm_w'])      # AdMSoftmaxLoss(192, n_classes, s=30, m=0.2)


# ======================= deterministic parameter init =======================
def init_params(key):
    kit = iter(jax.random.split(key, 128))

    def conv_p(cin, cout, k):
        # Weights pre-cast to bf16 once (MXU operand dtype); bias stays f32.
        w = (jax.random.normal(next(kit), (k, cin, cout), jnp.float32)
             / np.sqrt(k * cin)).astype(jnp.bfloat16)
        return {'w': w, 'b': jnp.zeros((cout,), jnp.float32)}

    def bn_p(c):
        return {'g': jnp.ones((c,), jnp.float32), 'b': jnp.zeros((c,), jnp.float32)}

    def tdnn_p(cin, cout, k):
        return {'conv': conv_p(cin, cout, k), 'bn': bn_p(cout)}

    P = {
        'block1': tdnn_p(N_MELS, ECAPA_CH, 5),
        'se_blocks': [],
        'mfa': tdnn_p(3 * ECAPA_CH, 3 * ECAPA_CH, 1),
        'asp_tdnn': tdnn_p(3 * 3 * ECAPA_CH, ATT_CH, 1),
        'asp_conv': conv_p(ATT_CH, 3 * ECAPA_CH, 1),
        'asp_bn': bn_p(2 * 3 * ECAPA_CH),
        'fc': conv_p(2 * 3 * ECAPA_CH, LIN_NEURONS, 1),
        'amm_w': jax.random.normal(next(kit), (N_CLASSES, LIN_NEURONS),
                                   jnp.float32) / np.sqrt(LIN_NEURONS),
    }
    cw = ECAPA_CH // RES2_SCALE
    for d in (2, 3, 4):
        P['se_blocks'].append({
            'tdnn1': tdnn_p(ECAPA_CH, ECAPA_CH, 1),
            'res2': [tdnn_p(cw, cw, 3) for _ in range(RES2_SCALE - 1)],
            'tdnn2': tdnn_p(ECAPA_CH, ECAPA_CH, 1),
            'se1': conv_p(ECAPA_CH, SE_CH, 1),
            'se2': conv_p(SE_CH, ECAPA_CH, 1),
            'dilation': d,
        })
    return P


def make_fbank_consts():
    n = np.arange(WIN)
    window = 0.54 - 0.46 * np.cos(2.0 * np.pi * n / WIN)      # periodic Hamming
    f = np.arange(N_FREQ)
    ang = 2.0 * np.pi * np.outer(n, f) / N_FFT
    wc = (window[:, None] * np.cos(ang)).astype(np.float32)
    ws = (window[:, None] * -np.sin(ang)).astype(np.float32)

    # TODO(synk): triangular mel filterbank approximates speechbrain's Filterbank.
    def hz2mel(h): return 2595.0 * np.log10(1.0 + h / 700.0)
    def mel2hz(m): return 700.0 * (10.0 ** (m / 2595.0) - 1.0)
    pts = mel2hz(np.linspace(hz2mel(0.0), hz2mel(SR / 2), N_MELS + 2))
    bins_hz = np.arange(N_FREQ) * SR / N_FFT
    fb = np.zeros((N_FREQ, N_MELS), np.float32)
    for m in range(N_MELS):
        lo, ce, hi = pts[m], pts[m + 1], pts[m + 2]
        fb[:, m] = np.maximum(0.0, np.minimum((bins_hz - lo) / (ce - lo),
                                              (hi - bins_hz) / (hi - ce)))
    wc = np.pad(wc, ((0, NFFT_PAD - WIN), (0, NFREQ_PAD - N_FREQ)))
    ws = np.pad(ws, ((0, NFFT_PAD - WIN), (0, NFREQ_PAD - N_FREQ)))
    fb = np.pad(fb, ((0, NFREQ_PAD - N_FREQ), (0, MEL_PAD - N_MELS)))
    return jnp.asarray(wc), jnp.asarray(ws), jnp.asarray(fb)


# ================================== main =====================================
if __name__ == "__main__":
    key = jax.random.PRNGKey(0)
    kx, ky, kp = jax.random.split(key, 3)

    B, L = 2, 3200                                   # small batch of waveforms
    x = jax.random.normal(kx, (B, L), jnp.float32) * 0.1
    y = jax.random.randint(ky, (B,), 0, N_CLASSES)

    params = init_params(kp)
    fb_consts = make_fbank_consts()

    loss = semi_informed_reverser_forward(x, y, params, fb_consts)
    loss = jax.block_until_ready(loss)

    emb = semi_informed_reverser_forward(x, None, params, fb_consts, embeddings=True)
    emb = jax.block_until_ready(emb)

    assert emb.shape == (B, LIN_NEURONS)
    assert bool(jnp.isfinite(loss))
    print("KERNEL_OK")
</pallas_src>

<mosaic_0001>
module attributes {stable_mosaic.version = 11 : i64} {
  func.func @_fbank_kernel(%arg0: i32, %arg1: memref<128x512xf32, #tpu.memory_space<vmem>>, %arg2: memref<512x256xf32, #tpu.memory_space<vmem>>, %arg3: memref<512x256xf32, #tpu.memory_space<vmem>>, %arg4: memref<256x128xf32, #tpu.memory_space<vmem>>, %arg5: memref<128x128xf32, #tpu.memory_space<vmem>>) attributes {dimension_semantics = [#tpu.dimension_semantics<parallel>], iteration_bounds = array<i64: 1>, scalar_prefetch = 0 : i64, scratch_operands = 0 : i64, tpu.core_type = #tpu.core_type<tc>, window_params = [{transform_indices = @transform_0, window_bounds = array<i64: 128, 512>}, {pipeline_mode = #tpu.pipeline_mode<synchronous>, transform_indices = @transform_1, window_bounds = array<i64: 512, 256>}, {pipeline_mode = #tpu.pipeline_mode<synchronous>, transform_indices = @transform_2, window_bounds = array<i64: 512, 256>}, {pipeline_mode = #tpu.pipeline_mode<synchronous>, transform_indices = @transform_3, window_bounds = array<i64: 256, 128>}, {transform_indices = @transform_4, window_bounds = array<i64: 128, 128>}]} {
    %c0 = arith.constant 0 : index
    %c0_0 = arith.constant 0 : index
    %0 = vector.load %arg1[%c0, %c0_0] : memref<128x512xf32, #tpu.memory_space<vmem>>, vector<128x512xf32>
    %c0_1 = arith.constant 0 : index
    %c0_2 = arith.constant 0 : index
    %1 = vector.load %arg2[%c0_1, %c0_2] : memref<512x256xf32, #tpu.memory_space<vmem>>, vector<512x256xf32>
    %cst = arith.constant dense<0.000000e+00> : vector<128x256xf32>
    %2 = tpu.matmul %0, %1, %cst {dimension_numbers = #tpu.dot_dimension_numbers<[1], [0], [0], [1], [0, 0, 1, 1], [], []>} : vector<128x512xf32>, vector<512x256xf32>, vector<128x256xf32> -> vector<128x256xf32>
    %c0_3 = arith.constant 0 : index
    %c0_4 = arith.constant 0 : index
    %3 = vector.load %arg3[%c0_3, %c0_4] : memref<512x256xf32, #tpu.memory_space<vmem>>, vector<512x256xf32>
    %cst_5 = arith.constant dense<0.000000e+00> : vector<128x256xf32>
    %4 = tpu.matmul %0, %3, %cst_5 {dimension_numbers = #tpu.dot_dimension_numbers<[1], [0], [0], [1], [0, 0, 1, 1], [], []>} : vector<128x512xf32>, vector<512x256xf32>, vector<128x256xf32> -> vector<128x256xf32>
    %5 = arith.mulf %2, %2 : vector<128x256xf32>
    %6 = arith.mulf %4, %4 : vector<128x256xf32>
    %7 = arith.addf %5, %6 : vector<128x256xf32>
    %c0_6 = arith.constant 0 : index
    %c0_7 = arith.constant 0 : index
    %8 = vector.load %arg4[%c0_6, %c0_7] : memref<256x128xf32, #tpu.memory_space<vmem>>, vector<256x128xf32>
    %cst_8 = arith.constant dense<0.000000e+00> : vector<128x128xf32>
    %9 = tpu.matmul %7, %8, %cst_8 {dimension_numbers = #tpu.dot_dimension_numbers<[1], [0], [0], [1], [0, 0, 1, 1], [], []>} : vector<128x256xf32>, vector<256x128xf32>, vector<128x128xf32> -> vector<128x128xf32>
    %cst_9 = arith.constant 1.000000e-10 : f32
    %10 = vector.broadcast %cst_9 : f32 to vector<128x128xf32>
    %11 = arith.maximumf %9, %10 : vector<128x128xf32>
    %12 = math.log %11 : vector<128x128xf32>
    %cst_10 = arith.constant 0.434294492 : f32
    %13 = vector.broadcast %cst_10 : f32 to vector<128x128xf32>
    %14 = arith.mulf %12, %13 : vector<128x128xf32>
    %cst_11 = arith.constant 1.000000e+01 : f32
    %15 = vector.broadcast %cst_11 : f32 to vector<128x128xf32>
    %16 = arith.mulf %15, %14 : vector<128x128xf32>
    %c0_12 = arith.constant 0 : index
    %c0_13 = arith.constant 0 : index
    %17 = vector.load %arg5[%c0_12, %c0_13] : memref<128x128xf32, #tpu.memory_space<vmem>>, vector<128x128xf32>
    tpu.vector_store %arg5[%c0_12, %c0_13], %16 {strides = array<i32>} : memref<128x128xf32, #tpu.memory_space<vmem>>, vector<128x128xf32>,
    return
  }
  func.func @transform_0(%arg0: i32) -> (i32, i32) {
    %c0_i32 = arith.constant 0 : i32
    %c0_i32_0 = arith.constant 0 : i32
    return %arg0, %c0_i32 : i32, i32
  }
  func.func @transform_1(%arg0: i32) -> (i32, i32) {
    %c0_i32 = arith.constant 0 : i32
    %c0_i32_0 = arith.constant 0 : i32
    %c0_i32_1 = arith.constant 0 : i32
    return %c0_i32, %c0_i32_0 : i32, i32
  }
  func.func @transform_2(%arg0: i32) -> (i32, i32) {
    %c0_i32 = arith.constant 0 : i32
    %c0_i32_0 = arith.constant 0 : i32
    %c0_i32_1 = arith.constant 0 : i32
    return %c0_i32, %c0_i32_0 : i32, i32
  }
  func.func @transform_3(%arg0: i32) -> (i32, i32) {
    %c0_i32 = arith.constant 0 : i32
    %c0_i32_0 = arith.constant 0 : i32
    %c0_i32_1 = arith.constant 0 : i32
    return %c0_i32, %c0_i32_0 : i32, i32
  }
  func.func @transform_4(%arg0: i32) -> (i32, i32) {
    %c0_i32 = arith.constant 0 : i32
    %c0_i32_0 = arith.constant 0 : i32
    return %arg0, %c0_i32 : i32, i32
  }
}

</mosaic_0001>

<llo_original>
// kernel: fbank.1
$region0: #{fbank.1}
  #allocation0 [shape = 'u32[]', space=smem, size = 0x4, offset = 0x4, fixed_abs, tag = 'smem constant byte address 0x4 - core index']
  #allocation1 [shape = 'u32[72,128]{1,0:T(1,128)}', space=vmem, size = 0x9000, scoped, tag = 'internal scratch']
  %s0 = inlined_call_operand.vmem [shape: f32[128,512], index: 0, kind: input, shape index: {}]
  %s1 = inlined_call_operand.vmem [shape: f32[512,256], index: 1, kind: input, shape index: {}]
  %s2 = inlined_call_operand.vmem [shape: f32[512,256], index: 2, kind: input, shape index: {}]
  %s3 = inlined_call_operand.vmem [shape: f32[256,128], index: 3, kind: input, shape index: {}]
  %s4 = inlined_call_operand.vmem [shape: f32[128,128], index: 4, kind: output, shape index: {}]
  %s5 = sld [smem:[#allocation0]]
  $region26: #{fbank.1} parent=0
    _
  %s7 = ssub.s32 1, %s5
  %s8 = scalar_select 0, %s7, %s5
  // Predicated region
  $region2: #{fbank.1} parent=0 // pred_check
    _
  $region3: #{fbank.1} parent=0 // pred_check_branch
    %10 = sbr.rel (0) target = $region5
  $region4: #{fbank.1} parent=0 // pred_region
    _
  $region5: #{fbank.1} parent=0 // pred_fallthru
    _
  // Predicated region
  $region6: #{fbank.1} parent=0 // pred_check
    _
  $region7: #{fbank.1} parent=0 // pred_check_branch
    %12 = sbr.rel (0) target = $region9
  $region8: #{fbank.1} parent=0 // pred_region
    _
  $region9: #{fbank.1} parent=0 // pred_fallthru
    _
  // Predicated region
  $region10: #{fbank.1} parent=0 // pred_check
    _
  $region11: #{fbank.1} parent=0 // pred_check_branch
    %14 = sbr.rel (0) target = $region13
  $region12: #{fbank.1} parent=0 // pred_region
    _
  $region13: #{fbank.1} parent=0 // pred_fallthru
    _
  // Predicated region
  $region14: #{fbank.1} parent=0 // pred_check
    _
  $region15: #{fbank.1} parent=0 // pred_check_branch
    %16 = sbr.rel (0) target = $region17
  $region16: #{fbank.1} parent=0 // pred_region
    _
  $region17: #{fbank.1} parent=0 // pred_fallthru
    _
  %v17 = vld [vmem:[%s0] sm:$0xff]
  %v18 = vld [vmem:[%s0 + $0x8] sm:$0xff]
  %v19 = vld [vmem:[%s0 + $0x10] sm:$0xff]
  %v20 = vld [vmem:[%s0 + $0x18] sm:$0xff]
  %v21 = vld [vmem:[%s0 + $0x20] sm:$0xff]
  %v22 = vld [vmem:[%s0 + $0x28] sm:$0xff]
  %v23 = vld [vmem:[%s0 + $0x30] sm:$0xff]
  %v24 = vld [vmem:[%s0 + $0x38] sm:$0xff]
  %v25 = vld [vmem:[%s0 + $0x40] sm:$0xff]
  %v26 = vld [vmem:[%s0 + $0x48] sm:$0xff]
  %v27 = vld [vmem:[%s0 + $0x50] sm:$0xff]
  %v28 = vld [vmem:[%s0 + $0x58] sm:$0xff]
  %v29 = vld [vmem:[%s0 + $0x60] sm:$0xff]
  %v30 = vld [vmem:[%s0 + $0x68] sm:$0xff]
  %v31 = vld [vmem:[%s0 + $0x70] sm:$0xff]
  %v32 = vld [vmem:[%s0 + $0x78] sm:$0xff]
  %v33 = vld [vmem:[%s0 + $0x80] sm:$0xff]
  %v34 = vld [vmem:[%s0 + $0x88] sm:$0xff]
  %v35 = vld [vmem:[%s0 + $0x90] sm:$0xff]
  %v36 = vld [vmem:[%s0 + $0x98] sm:$0xff]
  %v37 = vld [vmem:[%s0 + $0xa0] sm:$0xff]
  %v38 = vld [vmem:[%s0 + $0xa8] sm:$0xff]
  %v39 = vld [vmem:[%s0 + $0xb0] sm:$0xff]
  %v40 = vld [vmem:[%s0 + $0xb8] sm:$0xff]
  %v41 = vld [vmem:[%s0 + $0xc0] sm:$0xff]
  %v42 = vld [vmem:[%s0 + $0xc8] sm:$0xff]
  %v43 = vld [vmem:[%s0 + $0xd0] sm:$0xff]
  %v44 = vld [vmem:[%s0 + $0xd8] sm:$0xff]
  %v45 = vld [vmem:[%s0 + $0xe0] sm:$0xff]
  %v46 = vld [vmem:[%s0 + $0xe8] sm:$0xff]
  %v47 = vld [vmem:[%s0 + $0xf0] sm:$0xff]
  %v48 = vld [vmem:[%s0 + $0xf8] sm:$0xff]
  %v49 = vld [vmem:[%s0 + $0x100] sm:$0xff]
  %v50 = vld [vmem:[%s0 + $0x108] sm:$0xff]
  %v51 = vld [vmem:[%s0 + $0x110] sm:$0xff]
  %v52 = vld [vmem:[%s0 + $0x118] sm:$0xff]
  %v53 = vld [vmem:[%s0 + $0x120] sm:$0xff]
  %v54 = vld [vmem:[%s0 + $0x128] sm:$0xff]
  %v55 = vld [vmem:[%s0 + $0x130] sm:$0xff]
  %v56 = vld [vmem:[%s0 + $0x138] sm:$0xff]
  %v57 = vld [vmem:[%s0 + $0x140] sm:$0xff]
  %v58 = vld [vmem:[%s0 + $0x148] sm:$0xff]
  %v59 = vld [vmem:[%s0 + $0x150] sm:$0xff]
  %v60 = vld [vmem:[%s0 + $0x158] sm:$0xff]
  %v61 = vld [vmem:[%s0 + $0x160] sm:$0xff]
  %v62 = vld [vmem:[%s0 + $0x168] sm:$0xff]
  %v63 = vld [vmem:[%s0 + $0x170] sm:$0xff]
  %v64 = vld [vmem:[%s0 + $0x178] sm:$0xff]
  %v65 = vld [vmem:[%s0 + $0x180] sm:$0xff]
  %v66 = vld [vmem:[%s0 + $0x188] sm:$0xff]
  %v67 = vld [vmem:[%s0 + $0x190] sm:$0xff]
  %v68 = vld [vmem:[%s0 + $0x198] sm:$0xff]
  %v69 = vld [vmem:[%s0 + $0x1a0] sm:$0xff]
  %v70 = vld [vmem:[%s0 + $0x1a8] sm:$0xff]
  %v71 = vld [vmem:[%s0 + $0x1b0] sm:$0xff]
  %v72 = vld [vmem:[%s0 + $0x1b8] sm:$0xff]
  %v73 = vld [vmem:[%s0 + $0x1c0] sm:$0xff]
  %v74 = vld [vmem:[%s0 + $0x1c8] sm:$0xff]
  %v75 = vld [vmem:[%s0 + $0x1d0] sm:$0xff]
  %v76 = vld [vmem:[%s0 + $0x1d8] sm:$0xff]
  %v77 = vld [vmem:[%s0 + $0x1e0] sm:$0xff]
  %v78 = vld [vmem:[%s0 + $0x1e8] sm:$0xff]
  %v79 = vld [vmem:[%s0 + $0x1f0] sm:$0xff]
  %v80 = vld [vmem:[%s0 + $0x1f8] sm:$0xff]
  %v81 = vld [vmem:[%s1] sm:$0xff]
  %v82 = vld [vmem:[%s1 + $0x8] sm:$0xff]
  %v83 = vld [vmem:[%s1 + $0x10] sm:$0xff]
  %v84 = vld [vmem:[%s1 + $0x18] sm:$0xff]
  %v85 = vld [vmem:[%s1 + $0x20] sm:$0xff]
  %v86 = vld [vmem:[%s1 + $0x28] sm:$0xff]
  %v87 = vld [vmem:[%s1 + $0x30] sm:$0xff]
  %v88 = vld [vmem:[%s1 + $0x38] sm:$0xff]
  %v89 = vld [vmem:[%s1 + $0x40] sm:$0xff]
  %v90 = vld [vmem:[%s1 + $0x48] sm:$0xff]
  %v91 = vld [vmem:[%s1 + $0x50] sm:$0xff]
  %v92 = vld [vmem:[%s1 + $0x58] sm:$0xff]
  %v93 = vld [vmem:[%s1 + $0x60] sm:$0xff]
  %v94 = vld [vmem:[%s1 + $0x68] sm:$0xff]
  %v95 = vld [vmem:[%s1 + $0x70] sm:$0xff]
  %v96 = vld [vmem:[%s1 + $0x78] sm:$0xff]
  %v97 = vld [vmem:[%s1 + $0x80] sm:$0xff]
  %v98 = vld [vmem:[%s1 + $0x88] sm:$0xff]
  %v99 = vld [vmem:[%s1 + $0x90] sm:$0xff]
  %v100 = vld [vmem:[%s1 + $0x98] sm:$0xff]
  %v101 = vld [vmem:[%s1 + $0xa0] sm:$0xff]
  %v102 = vld [vmem:[%s1 + $0xa8] sm:$0xff]
  %v103 = vld [vmem:[%s1 + $0xb0] sm:$0xff]
  %v104 = vld [vmem:[%s1 + $0xb8] sm:$0xff]
  %v105 = vld [vmem:[%s1 + $0xc0] sm:$0xff]
  %v106 = vld [vmem:[%s1 + $0xc8] sm:$0xff]
  %v107 = vld [vmem:[%s1 + $0xd0] sm:$0xff]
  %v108 = vld [vmem:[%s1 + $0xd8] sm:$0xff]
  %v109 = vld [vmem:[%s1 + $0xe0] sm:$0xff]
  %v110 = vld [vmem:[%s1 + $0xe8] sm:$0xff]
  %v111 = vld [vmem:[%s1 + $0xf0] sm:$0xff]
  %v112 = vld [vmem:[%s1 + $0xf8] sm:$0xff]
  %v113 = vld [vmem:[%s1 + $0x100] sm:$0xff]
  %v114 = vld [vmem:[%s1 + $0x108] sm:$0xff]
  %v115 = vld [vmem:[%s1 + $0x110] sm:$0xff]
  %v116 = vld [vmem:[%s1 + $0x118] sm:$0xff]
  %v117 = vld [vmem:[%s1 + $0x120] sm:$0xff]
  %v118 = vld [vmem:[%s1 + $0x128] sm:$0xff]
  %v119 = vld [vmem:[%s1 + $0x130] sm:$0xff]
  %v120 = vld [vmem:[%s1 + $0x138] sm:$0xff]
  %v121 = vld [vmem:[%s1 + $0x140] sm:$0xff]
  %v122 = vld [vmem:[%s1 + $0x148] sm:$0xff]
  %v123 = vld [vmem:[%s1 + $0x150] sm:$0xff]
  %v124 = vld [vmem:[%s1 + $0x158] sm:$0xff]
  %v125 = vld [vmem:[%s1 + $0x160] sm:$0xff]
  %v126 = vld [vmem:[%s1 + $0x168] sm:$0xff]
  %v127 = vld [vmem:[%s1 + $0x170] sm:$0xff]
  %v128 = vld [vmem:[%s1 + $0x178] sm:$0xff]
  %v129 = vld [vmem:[%s1 + $0x180] sm:$0xff]
  %v130 = vld [vmem:[%s1 + $0x188] sm:$0xff]
  %v131 = vld [vmem:[%s1 + $0x190] sm:$0xff]
  %v132 = vld [vmem:[%s1 + $0x198] sm:$0xff]
  %v133 = vld [vmem:[%s1 + $0x1a0] sm:$0xff]
  %v134 = vld [vmem:[%s1 + $0x1a8] sm:$0xff]
  %v135 = vld [vmem:[%s1 + $0x1b0] sm:$0xff]
  %v136 = vld [vmem:[%s1 + $0x1b8] sm:$0xff]
  %v137 = vld [vmem:[%s1 + $0x1c0] sm:$0xff]
  %v138 = vld [vmem:[%s1 + $0x1c8] sm:$0xff]
  %v139 = vld [vmem:[%s1 + $0x1d0] sm:$0xff]
  %v140 = vld [vmem:[%s1 + $0x1d8] sm:$0xff]
  %v141 = vld [vmem:[%s1 + $0x1e0] sm:$0xff]
  %v142 = vld [vmem:[%s1 + $0x1e8] sm:$0xff]
  %v143 = vld [vmem:[%s1 + $0x1f0] sm:$0xff]
  %v144 = vld [vmem:[%s1 + $0x1f8] sm:$0xff]
  %v145 = vld [vmem:[%s1 + $0x200] sm:$0xff]
  %v146 = vld [vmem:[%s1 + $0x208] sm:$0xff]
  %v147 = vld [vmem:[%s1 + $0x210] sm:$0xff]
  %v148 = vld [vmem:[%s1 + $0x218] sm:$0xff]
  %v149 = vld [vmem:[%s1 + $0x220] sm:$0xff]
  %v150 = vld [vmem:[%s1 + $0x228] sm:$0xff]
  %v151 = vld [vmem:[%s1 + $0x230] sm:$0xff]
  %v152 = vld [vmem:[%s1 + $0x238] sm:$0xff]
  %v153 = vld [vmem:[%s1 + $0x240] sm:$0xff]
  %v154 = vld [vmem:[%s1 + $0x248] sm:$0xff]
  %v155 = vld [vmem:[%s1 + $0x250] sm:$0xff]
  %v156 = vld [vmem:[%s1 + $0x258] sm:$0xff]
  %v157 = vld [vmem:[%s1 + $0x260] sm:$0xff]
  %v158 = vld [vmem:[%s1 + $0x268] sm:$0xff]
  %v159 = vld [vmem:[%s1 + $0x270] sm:$0xff]
  %v160 = vld [vmem:[%s1 + $0x278] sm:$0xff]
  %v161 = vld [vmem:[%s1 + $0x280] sm:$0xff]
  %v162 = vld [vmem:[%s1 + $0x288] sm:$0xff]
  %v163 = vld [vmem:[%s1 + $0x290] sm:$0xff]
  %v164 = vld [vmem:[%s1 + $0x298] sm:$0xff]
  %v165 = vld [vmem:[%s1 + $0x2a0] sm:$0xff]
  %v166 = vld [vmem:[%s1 + $0x2a8] sm:$0xff]
  %v167 = vld [vmem:[%s1 + $0x2b0] sm:$0xff]
  %v168 = vld [vmem:[%s1 + $0x2b8] sm:$0xff]
  %v169 = vld [vmem:[%s1 + $0x2c0] sm:$0xff]
  %v170 = vld [vmem:[%s1 + $0x2c8] sm:$0xff]
  %v171 = vld [vmem:[%s1 + $0x2d0] sm:$0xff]
  %v172 = vld [vmem:[%s1 + $0x2d8] sm:$0xff]
  %v173 = vld [vmem:[%s1 + $0x2e0] sm:$0xff]
  %v174 = vld [vmem:[%s1 + $0x2e8] sm:$0xff]
  %v175 = vld [vmem:[%s1 + $0x2f0] sm:$0xff]
  %v176 = vld [vmem:[%s1 + $0x2f8] sm:$0xff]
  %v177 = vld [vmem:[%s1 + $0x300] sm:$0xff]
  %v178 = vld [vmem:[%s1 + $0x308] sm:$0xff]
  %v179 = vld [vmem:[%s1 + $0x310] sm:$0xff]
  %v180 = vld [vmem:[%s1 + $0x318] sm:$0xff]
  %v181 = vld [vmem:[%s1 + $0x320] sm:$0xff]
  %v182 = vld [vmem:[%s1 + $0x328] sm:$0xff]
  %v183 = vld [vmem:[%s1 + $0x330] sm:$0xff]
  %v184 = vld [vmem:[%s1 + $0x338] sm:$0xff]
  %v185 = vld [vmem:[%s1 + $0x340] sm:$0xff]
  %v186 = vld [vmem:[%s1 + $0x348] sm:$0xff]
  %v187 = vld [vmem:[%s1 + $0x350] sm:$0xff]
  %v188 = vld [vmem:[%s1 + $0x358] sm:$0xff]
  %v189 = vld [vmem:[%s1 + $0x360] sm:$0xff]
  %v190 = vld [vmem:[%s1 + $0x368] sm:$0xff]
  %v191 = vld [vmem:[%s1 + $0x370] sm:$0xff]
  %v192 = vld [vmem:[%s1 + $0x378] sm:$0xff]
  %v193 = vld [vmem:[%s1 + $0x380] sm:$0xff]
  %v194 = vld [vmem:[%s1 + $0x388] sm:$0xff]
  %v195 = vld [vmem:[%s1 + $0x390] sm:$0xff]
  %v196 = vld [vmem:[%s1 + $0x398] sm:$0xff]
  %v197 = vld [vmem:[%s1 + $0x3a0] sm:$0xff]
  %v198 = vld [vmem:[%s1 + $0x3a8] sm:$0xff]
  %v199 = vld [vmem:[%s1 + $0x3b0] sm:$0xff]
  %v200 = vld [vmem:[%s1 + $0x3b8] sm:$0xff]
  %v201 = vld [vmem:[%s1 + $0x3c0] sm:$0xff]
  %v202 = vld [vmem:[%s1 + $0x3c8] sm:$0xff]
  %v203 = vld [vmem:[%s1 + $0x3d0] sm:$0xff]
  %v204 = vld [vmem:[%s1 + $0x3d8] sm:$0xff]
  %v205 = vld [vmem:[%s1 + $0x3e0] sm:$0xff]
  %v206 = vld [vmem:[%s1 + $0x3e8] sm:$0xff]
  %v207 = vld [vmem:[%s1 + $0x3f0] sm:$0xff]
  %v208 = vld [vmem:[%s1 + $0x3f8] sm:$0xff]
  %209 = vmatpush.msra.mxu0 %v111
  %210 = vmatpush.msra.mxu0 %v109
  %211 = vmatpush.msra.mxu0 %v107
  %212 = vmatpush.msra.mxu0 %v105
  %213 = vmatpush.msra.mxu0 %v103
  %214 = vmatpush.msra.mxu0 %v101
  %215 = vmatpush.msra.mxu0 %v99
  %216 = vmatpush.msra.mxu0 %v97
  %217 = vmatpush.msra.mxu0 %v95
  %218 = vmatpush.msra.mxu0 %v93
  %219 = vmatpush.msra.mxu0 %v91
  %220 = vmatpush.msra.mxu0 %v89
  %221 = vmatpush.msra.mxu0 %v87
  %222 = vmatpush.msra.mxu0 %v85
  %223 = vmatpush.msra.mxu0 %v83
  %224 = vmatpush.msra.mxu0 %v81
  %225 = vmatmul.f32.gmra.mxu0 %v17
  %v226 = vpop.f32.mrf.mxu0
  %v227 = vadd.f32 0.0, %v226
  %228 = vmatmul.f32.gmra.mxu0 %v21
  %v229 = vpop.f32.mrf.mxu0
  %v230 = vadd.f32 0.0, %v229
  %231 = vmatmul.f32.gmra.mxu0 %v25
  %v232 = vpop.f32.mrf.mxu0
  %v233 = vadd.f32 0.0, %v232
  %234 = vmatmul.f32.gmra.mxu0 %v29
  %v235 = vpop.f32.mrf.mxu0
  %v236 = vadd.f32 0.0, %v235
  %237 = vmatmul.f32.gmra.mxu0 %v33
  %v238 = vpop.f32.mrf.mxu0
  %v239 = vadd.f32 0.0, %v238
  %240 = vmatmul.f32.gmra.mxu0 %v37
  %v241 = vpop.f32.mrf.mxu0
  %v242 = vadd.f32 0.0, %v241
  %243 = vmatmul.f32.gmra.mxu0 %v41
  %v244 = vpop.f32.mrf.mxu0
  %v245 = vadd.f32 0.0, %v244
  %246 = vmatmul.f32.gmra.mxu0 %v45
  %v247 = vpop.f32.mrf.mxu0
  %v248 = vadd.f32 0.0, %v247
  %249 = vmatmul.f32.gmra.mxu0 %v49
  %v250 = vpop.f32.mrf.mxu0
  %v251 = vadd.f32 0.0, %v250
  %252 = vmatmul.f32.gmra.mxu0 %v53
  %v253 = vpop.f32.mrf.mxu0
  %v254 = vadd.f32 0.0, %v253
  %255 = vmatmul.f32.gmra.mxu0 %v57
  %v256 = vpop.f32.mrf.mxu0
  %v257 = vadd.f32 0.0, %v256
  %258 = vmatmul.f32.gmra.mxu0 %v61
  %v259 = vpop.f32.mrf.mxu0
  %v260 = vadd.f32 0.0, %v259
  %261 = vmatmul.f32.gmra.mxu0 %v65
  %v262 = vpop.f32.mrf.mxu0
  %v263 = vadd.f32 0.0, %v262
  %264 = vmatmul.f32.gmra.mxu0 %v69
  %v265 = vpop.f32.mrf.mxu0
  %v266 = vadd.f32 0.0, %v265
  %267 = vmatmul.f32.gmra.mxu0 %v73
  %v268 = vpop.f32.mrf.mxu0
  %v269 = vadd.f32 0.0, %v268
  %270 = vmatmul.f32.gmra.mxu0 %v77
  %v271 = vpop.f32.mrf.mxu0
  %v272 = vadd.f32 0.0, %v271
  %273 = vdwg.mxu0
  %274 = vmatpush.msra.mxu0 %v143
  %275 = vmatpush.msra.mxu0 %v141
  %276 = vmatpush.msra.mxu0 %v139
  %277 = vmatpush.msra.mxu0 %v137
  %278 = vmatpush.msra.mxu0 %v135
  %279 = vmatpush.msra.mxu0 %v133
  %280 = vmatpush.msra.mxu0 %v131
  %281 = vmatpush.msra.mxu0 %v129
  %282 = vmatpush.msra.mxu0 %v127
  %283 = vmatpush.msra.mxu0 %v125
  %284 = vmatpush.msra.mxu0 %v123
  %285 = vmatpush.msra.mxu0 %v121
  %286 = vmatpush.msra.mxu0 %v119
  %287 = vmatpush.msra.mxu0 %v117
  %288 = vmatpush.msra.mxu0 %v115
  %289 = vmatpush.msra.mxu0 %v113
  %290 = vmatmul.f32.gmra.mxu0 %v18
  %v291 = vpop.f32.mrf.mxu0
  %v292 = vadd.f32 %v227, %v291
  %293 = vmatmul.f32.gmra.mxu0 %v22
  %v294 = vpop.f32.mrf.mxu0
  %v295 = vadd.f32 %v230, %v294
  %296 = vmatmul.f32.gmra.mxu0 %v26
  %v297 = vpop.f32.mrf.mxu0
  %v298 = vadd.f32 %v233, %v297
  %299 = vmatmul.f32.gmra.mxu0 %v30
  %v300 = vpop.f32.mrf.mxu0
  %v301 = vadd.f32 %v236, %v300
  %302 = vmatmul.f32.gmra.mxu0 %v34
  %v303 = vpop.f32.mrf.mxu0
  %v304 = vadd.f32 %v239, %v303
  %305 = vmatmul.f32.gmra.mxu0 %v38
  %v306 = vpop.f32.mrf.mxu0
  %v307 = vadd.f32 %v242, %v306
  %308 = vmatmul.f32.gmra.mxu0 %v42
  %v309 = vpop.f32.mrf.mxu0
  %v310 = vadd.f32 %v245, %v309
  %311 = vmatmul.f32.gmra.mxu0 %v46
  %v312 = vpop.f32.mrf.mxu0
  %v313 = vadd.f32 %v248, %v312
  %314 = vmatmul.f32.gmra.mxu0 %v50
  %v315 = vpop.f32.mrf.mxu0
  %v316 = vadd.f32 %v251, %v315
  %317 = vmatmul.f32.gmra.mxu0 %v54
  %v318 = vpop.f32.mrf.mxu0
  %v319 = vadd.f32 %v254, %v318
  %320 = vmatmul.f32.gmra.mxu0 %v58
  %v321 = vpop.f32.mrf.mxu0
  %v322 = vadd.f32 %v257, %v321
  %323 = vmatmul.f32.gmra.mxu0 %v62
  %v324 = vpop.f32.mrf.mxu0
  %v325 = vadd.f32 %v260, %v324
  %326 = vmatmul.f32.gmra.mxu0 %v66
  %v327 = vpop.f32.mrf.mxu0
  %v328 = vadd.f32 %v263, %v327
  %329 = vmatmul.f32.gmra.mxu0 %v70
  %v330 = vpop.f32.mrf.mxu0
  %v331 = vadd.f32 %v266, %v330
  %332 = vmatmul.f32.gmra.mxu0 %v74
  %v333 = vpop.f32.mrf.mxu0
  %v334 = vadd.f32 %v269, %v333
  %335 = vmatmul.f32.gmra.mxu0 %v78
  %v336 = vpop.f32.mrf.mxu0
  %v337 = vadd.f32 %v272, %v336
  %338 = vdwg.mxu0
  %339 = vmatpush.msra.mxu0 %v175
  %340 = vmatpush.msra.mxu0 %v173
  %341 = vmatpush.msra.mxu0 %v171
  %342 = vmatpush.msra.mxu0 %v169
  %343 = vmatpush.msra.mxu0 %v167
  %344 = vmatpush.msra.mxu0 %v165
  %345 = vmatpush.msra.mxu0 %v163
  %346 = vmatpush.msra.mxu0 %v161
  %347 = vmatpush.msra.mxu0 %v159
  %348 = vmatpush.msra.mxu0 %v157
  %349 = vmatpush.msra.mxu0 %v155
  %350 = vmatpush.msra.mxu0 %v153
  %351 = vmatpush.msra.mxu0 %v151
  %352 = vmatpush.msra.mxu0 %v149
  %353 = vmatpush.msra.mxu0 %v147
  %354 = vmatpush.msra.mxu0 %v145
  %355 = vmatmul.f32.gmra.mxu0 %v19
  %v356 = vpop.f32.mrf.mxu0
  %v357 = vadd.f32 %v292, %v356
  %358 = vmatmul.f32.gmra.mxu0 %v23
  %v359 = vpop.f32.mrf.mxu0
  %v360 = vadd.f32 %v295, %v359
  %361 = vmatmul.f32.gmra.mxu0 %v27
  %v362 = vpop.f32.mrf.mxu0
  %v363 = vadd.f32 %v298, %v362
  %364 = vmatmul.f32.gmra.mxu0 %v31
  %v365 = vpop.f32.mrf.mxu0
  %v366 = vadd.f32 %v301, %v365
  %367 = vmatmul.f32.gmra.mxu0 %v35
  %v368 = vpop.f32.mrf.mxu0
  %v369 = vadd.f32 %v304, %v368
  %370 = vmatmul.f32.gmra.mxu0 %v39
  %v371 = vpop.f32.mrf.mxu0
  %v372 = vadd.f32 %v307, %v371
  %373 = vmatmul.f32.gmra.mxu0 %v43
  %v374 = vpop.f32.mrf.mxu0
  %v375 = vadd.f32 %v310, %v374
  %376 = vmatmul.f32.gmra.mxu0 %v47
  %v377 = vpop.f32.mrf.mxu0
  %v378 = vadd.f32 %v313, %v377
  %379 = vmatmul.f32.gmra.mxu0 %v51
  %v380 = vpop.f32.mrf.mxu0
  %v381 = vadd.f32 %v316, %v380
  %382 = vmatmul.f32.gmra.mxu0 %v55
  %v383 = vpop.f32.mrf.mxu0
  %v384 = vadd.f32 %v319, %v383
  %385 = vmatmul.f32.gmra.mxu0 %v59
  %v386 = vpop.f32.mrf.mxu0
  %v387 = vadd.f32 %v322, %v386
  %388 = vmatmul.f32.gmra.mxu0 %v63
  %v389 = vpop.f32.mrf.mxu0
  %v390 = vadd.f32 %v325, %v389
  %391 = vmatmul.f32.gmra.mxu0 %v67
  %v392 = vpop.f32.mrf.mxu0
  %v393 = vadd.f32 %v328, %v392
  %394 = vmatmul.f32.gmra.mxu0 %v71
  %v395 = vpop.f32.mrf.mxu0
  %v396 = vadd.f32 %v331, %v395
  %397 = vmatmul.f32.gmra.mxu0 %v75
  %v398 = vpop.f32.mrf.mxu0
  %v399 = vadd.f32 %v334, %v398
  %400 = vmatmul.f32.gmra.mxu0 %v79
  %v401 = vpop.f32.mrf.mxu0
  %v402 = vadd.f32 %v337, %v401
  %403 = vdwg.mxu0
  %404 = vmatpush.msra.mxu0 %v207
  %405 = vmatpush.msra.mxu0 %v205
  %406 = vmatpush.msra.mxu0 %v203
  %407 = vmatpush.msra.mxu0 %v201
  %408 = vmatpush.msra.mxu0 %v199
  %409 = vmatpush.msra.mxu0 %v197
  %410 = vmatpush.msra.mxu0 %v195
  %411 = vmatpush.msra.mxu0 %v193
  %412 = vmatpush.msra.mxu0 %v191
  %413 = vmatpush.msra.mxu0 %v189
  %414 = vmatpush.msra.mxu0 %v187
  %415 = vmatpush.msra.mxu0 %v185
  %416 = vmatpush.msra.mxu0 %v183
  %417 = vmatpush.msra.mxu0 %v181
  %418 = vmatpush.msra.mxu0 %v179
  %419 = vmatpush.msra.mxu0 %v177
  %420 = vmatmul.f32.gmra.mxu0 %v20
  %v421 = vpop.f32.mrf.mxu0
  %v422 = vadd.f32 %v357, %v421
  %423 = vmatmul.f32.gmra.mxu0 %v24
  %v424 = vpop.f32.mrf.mxu0
  %v425 = vadd.f32 %v360, %v424
  %426 = vmatmul.f32.gmra.mxu0 %v28
  %v427 = vpop.f32.mrf.mxu0
  %v428 = vadd.f32 %v363, %v427
  %429 = vmatmul.f32.gmra.mxu0 %v32
  %v430 = vpop.f32.mrf.mxu0
  %v431 = vadd.f32 %v366, %v430
  %432 = vmatmul.f32.gmra.mxu0 %v36
  %v433 = vpop.f32.mrf.mxu0
  %v434 = vadd.f32 %v369, %v433
  %435 = vmatmul.f32.gmra.mxu0 %v40
  %v436 = vpop.f32.mrf.mxu0
  %v437 = vadd.f32 %v372, %v436
  %438 = vmatmul.f32.gmra.mxu0 %v44
  %v439 = vpop.f32.mrf.mxu0
  %v440 = vadd.f32 %v375, %v439
  %441 = vmatmul.f32.gmra.mxu0 %v48
  %v442 = vpop.f32.mrf.mxu0
  %v443 = vadd.f32 %v378, %v442
  %444 = vmatmul.f32.gmra.mxu0 %v52
  %v445 = vpop.f32.mrf.mxu0
  %v446 = vadd.f32 %v381, %v445
  %447 = vmatmul.f32.gmra.mxu0 %v56
  %v448 = vpop.f32.mrf.mxu0
  %v449 = vadd.f32 %v384, %v448
  %450 = vmatmul.f32.gmra.mxu0 %v60
  %v451 = vpop.f32.mrf.mxu0
  %v452 = vadd.f32 %v387, %v451
  %453 = vmatmul.f32.gmra.mxu0 %v64
  %v454 = vpop.f32.mrf.mxu0
  %v455 = vadd.f32 %v390, %v454
  %456 = vmatmul.f32.gmra.mxu0 %v68
  %v457 = vpop.f32.mrf.mxu0
  %v458 = vadd.f32 %v393, %v457
  %459 = vmatmul.f32.gmra.mxu0 %v72
  %v460 = vpop.f32.mrf.mxu0
  %v461 = vadd.f32 %v396, %v460
  %462 = vmatmul.f32.gmra.mxu0 %v76
  %v463 = vpop.f32.mrf.mxu0
  %v464 = vadd.f32 %v399, %v463
  %465 = vmatmul.f32.gmra.mxu0 %v80
  %v466 = vpop.f32.mrf.mxu0
  %v467 = vadd.f32 %v402, %v466
  %468 = vdwg.mxu0
  %469 = vmatpush.msra.mxu0 %v112
  %470 = vmatpush.msra.mxu0 %v110
  %471 = vmatpush.msra.mxu0 %v108
  %472 = vmatpush.msra.mxu0 %v106
  %473 = vmatpush.msra.mxu0 %v104
  %474 = vmatpush.msra.mxu0 %v102
  %475 = vmatpush.msra.mxu0 %v100
  %476 = vmatpush.msra.mxu0 %v98
  %477 = vmatpush.msra.mxu0 %v96
  %478 = vmatpush.msra.mxu0 %v94
  %479 = vmatpush.msra.mxu0 %v92
  %480 = vmatpush.msra.mxu0 %v90
  %481 = vmatpush.msra.mxu0 %v88
  %482 = vmatpush.msra.mxu0 %v86
  %483 = vmatpush.msra.mxu0 %v84
  %484 = vmatpush.msra.mxu0 %v82
  %485 = vmatmul.f32.gmra.mxu0 %v17
  %v486 = vpop.f32.mrf.mxu0
  %v487 = vadd.f32 0.0, %v486
  %488 = vmatmul.f32.gmra.mxu0 %v21
  %v489 = vpop.f32.mrf.mxu0
  %v490 = vadd.f32 0.0, %v489
  %491 = vmatmul.f32.gmra.mxu0 %v25
  %v492 = vpop.f32.mrf.mxu0
  %v493 = vadd.f32 0.0, %v492
  %494 = vmatmul.f32.gmra.mxu0 %v29
  %v495 = vpop.f32.mrf.mxu0
  %v496 = vadd.f32 0.0, %v495
  %497 = vmatmul.f32.gmra.mxu0 %v33
  %v498 = vpop.f32.mrf.mxu0
  %v499 = vadd.f32 0.0, %v498
  %500 = vmatmul.f32.gmra.mxu0 %v37
  %v501 = vpop.f32.mrf.mxu0
  %v502 = vadd.f32 0.0, %v501
  %503 = vmatmul.f32.gmra.mxu0 %v41
  %v504 = vpop.f32.mrf.mxu0
  %v505 = vadd.f32 0.0, %v504
  %506 = vmatmul.f32.gmra.mxu0 %v45
  %v507 = vpop.f32.mrf.mxu0
  %v508 = vadd.f32 0.0, %v507
  %509 = vmatmul.f32.gmra.mxu0 %v49
  %v510 = vpop.f32.mrf.mxu0
  %v511 = vadd.f32 0.0, %v510
  %512 = vmatmul.f32.gmra.mxu0 %v53
  %v513 = vpop.f32.mrf.mxu0
  %v514 = vadd.f32 0.0, %v513
  %515 = vmatmul.f32.gmra.mxu0 %v57
  %v516 = vpop.f32.mrf.mxu0
  %v517 = vadd.f32 0.0, %v516
  %518 = vmatmul.f32.gmra.mxu0 %v61
  %v519 = vpop.f32.mrf.mxu0
  %v520 = vadd.f32 0.0, %v519
  %521 = vmatmul.f32.gmra.mxu0 %v65
  %v522 = vpop.f32.mrf.mxu0
  %v523 = vadd.f32 0.0, %v522
  %524 = vmatmul.f32.gmra.mxu0 %v69
  %v525 = vpop.f32.mrf.mxu0
  %v526 = vadd.f32 0.0, %v525
  %527 = vmatmul.f32.gmra.mxu0 %v73
  %v528 = vpop.f32.mrf.mxu0
  %v529 = vadd.f32 0.0, %v528
  %530 = vmatmul.f32.gmra.mxu0 %v77
  %v531 = vpop.f32.mrf.mxu0
  %v532 = vadd.f32 0.0, %v531
  %533 = vdwg.mxu0
  %534 = vmatpush.msra.mxu0 %v144
  %535 = vmatpush.msra.mxu0 %v142
  %536 = vmatpush.msra.mxu0 %v140
  %537 = vmatpush.msra.mxu0 %v138
  %538 = vmatpush.msra.mxu0 %v136
  %539 = vmatpush.msra.mxu0 %v134
  %540 = vmatpush.msra.mxu0 %v132
  %541 = vmatpush.msra.mxu0 %v130
  %542 = vmatpush.msra.mxu0 %v128
  %543 = vmatpush.msra.mxu0 %v126
  %544 = vmatpush.msra.mxu0 %v124
  %545 = vmatpush.msra.mxu0 %v122
  %546 = vmatpush.msra.mxu0 %v120
  %547 = vmatpush.msra.mxu0 %v118
  %548 = vmatpush.msra.mxu0 %v116
  %549 = vmatpush.msra.mxu0 %v114
  %550 = vmatmul.f32.gmra.mxu0 %v18
  %v551 = vpop.f32.mrf.mxu0
  %v552 = vadd.f32 %v487, %v551
  %553 = vmatmul.f32.gmra.mxu0 %v22
  %v554 = vpop.f32.mrf.mxu0
  %v555 = vadd.f32 %v490, %v554
  %556 = vmatmul.f32.gmra.mxu0 %v26
  %v557 = vpop.f32.mrf.mxu0
  %v558 = vadd.f32 %v493, %v557
  %559 = vmatmul.f32.gmra.mxu0 %v30
  %v560 = vpop.f32.mrf.mxu0
  %v561 = vadd.f32 %v496, %v560
  %562 = vmatmul.f32.gmra.mxu0 %v34
  %v563 = vpop.f32.mrf.mxu0
  %v564 = vadd.f32 %v499, %v563
  %565 = vmatmul.f32.gmra.mxu0 %v38
  %v566 = vpop.f32.mrf.mxu0
  %v567 = vadd.f32 %v502, %v566
  %568 = vmatmul.f32.gmra.mxu0 %v42
  %v569 = vpop.f32.mrf.mxu0
  %v570 = vadd.f32 %v505, %v569
  %571 = vmatmul.f32.gmra.mxu0 %v46
  %v572 = vpop.f32.mrf.mxu0
  %v573 = vadd.f32 %v508, %v572
  %574 = vmatmul.f32.gmra.mxu0 %v50
  %v575 = vpop.f32.mrf.mxu0
  %v576 = vadd.f32 %v511, %v575
  %577 = vmatmul.f32.gmra.mxu0 %v54
  %v578 = vpop.f32.mrf.mxu0
  %v579 = vadd.f32 %v514, %v578
  %580 = vmatmul.f32.gmra.mxu0 %v58
  %v581 = vpop.f32.mrf.mxu0
  %v582 = vadd.f32 %v517, %v581
  %583 = vmatmul.f32.gmra.mxu0 %v62
  %v584 = vpop.f32.mrf.mxu0
  %v585 = vadd.f32 %v520, %v584
  %586 = vmatmul.f32.gmra.mxu0 %v66
  %v587 = vpop.f32.mrf.mxu0
  %v588 = vadd.f32 %v523, %v587
  %589 = vmatmul.f32.gmra.mxu0 %v70
  %v590 = vpop.f32.mrf.mxu0
  %v591 = vadd.f32 %v526, %v590
  %592 = vmatmul.f32.gmra.mxu0 %v74
  %v593 = vpop.f32.mrf.mxu0
  %v594 = vadd.f32 %v529, %v593
  %595 = vmatmul.f32.gmra.mxu0 %v78
  %v596 = vpop.f32.mrf.mxu0
  %v597 = vadd.f32 %v532, %v596
  %598 = vdwg.mxu0
  %599 = vmatpush.msra.mxu0 %v176
  %600 = vmatpush.msra.mxu0 %v174
  %601 = vmatpush.msra.mxu0 %v172
  %602 = vmatpush.msra.mxu0 %v170
  %603 = vmatpush.msra.mxu0 %v168
  %604 = vmatpush.msra.mxu0 %v166
  %605 = vmatpush.msra.mxu0 %v164
  %606 = vmatpush.msra.mxu0 %v162
  %607 = vmatpush.msra.mxu0 %v160
  %608 = vmatpush.msra.mxu0 %v158
  %609 = vmatpush.msra.mxu0 %v156
  %610 = vmatpush.msra.mxu0 %v154
  %611 = vmatpush.msra.mxu0 %v152
  %612 = vmatpush.msra.mxu0 %v150
  %613 = vmatpush.msra.mxu0 %v148
  %614 = vmatpush.msra.mxu0 %v146
  %615 = vmatmul.f32.gmra.mxu0 %v19
  %v616 = vpop.f32.mrf.mxu0
  %v617 = vadd.f32 %v552, %v616
  %618 = vmatmul.f32.gmra.mxu0 %v23
  %v619 = vpop.f32.mrf.mxu0
  %v620 = vadd.f32 %v555, %v619
  %621 = vmatmul.f32.gmra.mxu0 %v27
  %v622 = vpop.f32.mrf.mxu0
  %v623 = vadd.f32 %v558, %v622
  %624 = vmatmul.f32.gmra.mxu0 %v31
  %v625 = vpop.f32.mrf.mxu0
  %v626 = vadd.f32 %v561, %v625
  %627 = vmatmul.f32.gmra.mxu0 %v35
  %v628 = vpop.f32.mrf.mxu0
  %v629 = vadd.f32 %v564, %v628
  %630 = vmatmul.f32.gmra.mxu0 %v39
  %v631 = vpop.f32.mrf.mxu0
  %v632 = vadd.f32 %v567, %v631
  %633 = vmatmul.f32.gmra.mxu0 %v43
  %v634 = vpop.f32.mrf.mxu0
  %v635 = vadd.f32 %v570, %v634
  %636 = vmatmul.f32.gmra.mxu0 %v47
  %v637 = vpop.f32.mrf.mxu0
  %v638 = vadd.f32 %v573, %v637
  %639 = vmatmul.f32.gmra.mxu0 %v51
  %v640 = vpop.f32.mrf.mxu0
  %v641 = vadd.f32 %v576, %v640
  %642 = vmatmul.f32.gmra.mxu0 %v55
  %v643 = vpop.f32.mrf.mxu0
  %v644 = vadd.f32 %v579, %v643
  %645 = vmatmul.f32.gmra.mxu0 %v59
  %v646 = vpop.f32.mrf.mxu0
  %v647 = vadd.f32 %v582, %v646
  %648 = vmatmul.f32.gmra.mxu0 %v63
  %v649 = vpop.f32.mrf.mxu0
  %v650 = vadd.f32 %v585, %v649
  %651 = vmatmul.f32.gmra.mxu0 %v67
  %v652 = vpop.f32.mrf.mxu0
  %v653 = vadd.f32 %v588, %v652
  %654 = vmatmul.f32.gmra.mxu0 %v71
  %v655 = vpop.f32.mrf.mxu0
  %v656 = vadd.f32 %v591, %v655
  %657 = vmatmul.f32.gmra.mxu0 %v75
  %v658 = vpop.f32.mrf.mxu0
  %v659 = vadd.f32 %v594, %v658
  %660 = vmatmul.f32.gmra.mxu0 %v79
  %v661 = vpop.f32.mrf.mxu0
  %v662 = vadd.f32 %v597, %v661
  %663 = vdwg.mxu0
  %664 = vmatpush.msra.mxu0 %v208
  %665 = vmatpush.msra.mxu0 %v206
  %666 = vmatpush.msra.mxu0 %v204
  %667 = vmatpush.msra.mxu0 %v202
  %668 = vmatpush.msra.mxu0 %v200
  %669 = vmatpush.msra.mxu0 %v198
  %670 = vmatpush.msra.mxu0 %v196
  %671 = vmatpush.msra.mxu0 %v194
  %672 = vmatpush.msra.mxu0 %v192
  %673 = vmatpush.msra.mxu0 %v190
  %674 = vmatpush.msra.mxu0 %v188
  %675 = vmatpush.msra.mxu0 %v186
  %676 = vmatpush.msra.mxu0 %v184
  %677 = vmatpush.msra.mxu0 %v182
  %678 = vmatpush.msra.mxu0 %v180
  %679 = vmatpush.msra.mxu0 %v178
  %680 = vmatmul.f32.gmra.mxu0 %v20
  %v681 = vpop.f32.mrf.mxu0
  %v682 = vadd.f32 %v617, %v681
  %683 = vmatmul.f32.gmra.mxu0 %v24
  %v684 = vpop.f32.mrf.mxu0
  %v685 = vadd.f32 %v620, %v684
  %686 = vmatmul.f32.gmra.mxu0 %v28
  %v687 = vpop.f32.mrf.mxu0
  %v688 = vadd.f32 %v623, %v687
  %689 = vmatmul.f32.gmra.mxu0 %v32
  %v690 = vpop.f32.mrf.mxu0
  %v691 = vadd.f32 %v626, %v690
  %692 = vmatmul.f32.gmra.mxu0 %v36
  %v693 = vpop.f32.mrf.mxu0
  %v694 = vadd.f32 %v629, %v693
  %695 = vmatmul.f32.gmra.mxu0 %v40
  %v696 = vpop.f32.mrf.mxu0
  %v697 = vadd.f32 %v632, %v696
  %698 = vmatmul.f32.gmra.mxu0 %v44
  %v699 = vpop.f32.mrf.mxu0
  %v700 = vadd.f32 %v635, %v699
  %701 = vmatmul.f32.gmra.mxu0 %v48
  %v702 = vpop.f32.mrf.mxu0
  %v703 = vadd.f32 %v638, %v702
  %704 = vmatmul.f32.gmra.mxu0 %v52
  %v705 = vpop.f32.mrf.mxu0
  %v706 = vadd.f32 %v641, %v705
  %707 = vmatmul.f32.gmra.mxu0 %v56
  %v708 = vpop.f32.mrf.mxu0
  %v709 = vadd.f32 %v644, %v708
  %710 = vmatmul.f32.gmra.mxu0 %v60
  %v711 = vpop.f32.mrf.mxu0
  %v712 = vadd.f32 %v647, %v711
  %713 = vmatmul.f32.gmra.mxu0 %v64
  %v714 = vpop.f32.mrf.mxu0
  %v715 = vadd.f32 %v650, %v714
  %716 = vmatmul.f32.gmra.mxu0 %v68
  %v717 = vpop.f32.mrf.mxu0
  %v718 = vadd.f32 %v653, %v717
  %719 = vmatmul.f32.gmra.mxu0 %v72
  %v720 = vpop.f32.mrf.mxu0
  %v721 = vadd.f32 %v656, %v720
  %722 = vmatmul.f32.gmra.mxu0 %v76
  %v723 = vpop.f32.mrf.mxu0
  %v724 = vadd.f32 %v659, %v723
  %725 = vmatmul.f32.gmra.mxu0 %v80
  %v726 = vpop.f32.mrf.mxu0
  %v727 = vadd.f32 %v662, %v726
  %728 = vdwg.mxu0
  %v729 = vld [vmem:[%s2] sm:$0xff]
  %v730 = vld [vmem:[%s2 + $0x8] sm:$0xff]
  %v731 = vld [vmem:[%s2 + $0x10] sm:$0xff]
  %v732 = vld [vmem:[%s2 + $0x18] sm:$0xff]
  %v733 = vld [vmem:[%s2 + $0x20] sm:$0xff]
  %v734 = vld [vmem:[%s2 + $0x28] sm:$0xff]
  %v735 = vld [vmem:[%s2 + $0x30] sm:$0xff]
  %v736 = vld [vmem:[%s2 + $0x38] sm:$0xff]
  %v737 = vld [vmem:[%s2 + $0x40] sm:$0xff]
  %v738 = vld [vmem:[%s2 + $0x48] sm:$0xff]
  %v739 = vld [vmem:[%s2 + $0x50] sm:$0xff]
  %v740 = vld [vmem:[%s2 + $0x58] sm:$0xff]
  %v741 = vld [vmem:[%s2 + $0x60] sm:$0xff]
  %v742 = vld [vmem:[%s2 + $0x68] sm:$0xff]
  %v743 = vld [vmem:[%s2 + $0x70] sm:$0xff]
  %v744 = vld [vmem:[%s2 + $0x78] sm:$0xff]
  %v745 = vld [vmem:[%s2 + $0x80] sm:$0xff]
  %v746 = vld [vmem:[%s2 + $0x88] sm:$0xff]
  %v747 = vld [vmem:[%s2 + $0x90] sm:$0xff]
  %v748 = vld [vmem:[%s2 + $0x98] sm:$0xff]
  %v749 = vld [vmem:[%s2 + $0xa0] sm:$0xff]
  %v750 = vld [vmem:[%s2 + $0xa8] sm:$0xff]
  %v751 = vld [vmem:[%s2 + $0xb0] sm:$0xff]
  %v752 = vld [vmem:[%s2 + $0xb8] sm:$0xff]
  %v753 = vld [vmem:[%s2 + $0xc0] sm:$0xff]
  %v754 = vld [vmem:[%s2 + $0xc8] sm:$0xff]
  %v755 = vld [vmem:[%s2 + $0xd0] sm:$0xff]
  %v756 = vld [vmem:[%s2 + $0xd8] sm:$0xff]
  %v757 = vld [vmem:[%s2 + $0xe0] sm:$0xff]
  %v758 = vld [vmem:[%s2 + $0xe8] sm:$0xff]
  %v759 = vld [vmem:[%s2 + $0xf0] sm:$0xff]
  %v760 = vld [vmem:[%s2 + $0xf8] sm:$0xff]
  %v761 = vld [vmem:[%s2 + $0x100] sm:$0xff]
  %v762 = vld [vmem:[%s2 + $0x108] sm:$0xff]
  %v763 = vld [vmem:[%s2 + $0x110] sm:$0xff]
  %v764 = vld [vmem:[%s2 + $0x118] sm:$0xff]
  %v765 = vld [vmem:[%s2 + $0x120] sm:$0xff]
  %v766 = vld [vmem:[%s2 + $0x128] sm:$0xff]
  %v767 = vld [vmem:[%s2 + $0x130] sm:$0xff]
  %v768 = vld [vmem:[%s2 + $0x138] sm:$0xff]
  %v769 = vld [vmem:[%s2 + $0x140] sm:$0xff]
  %v770 = vld [vmem:[%s2 + $0x148] sm:$0xff]
  %v771 = vld [vmem:[%s2 + $0x150] sm:$0xff]
  %v772 = vld [vmem:[%s2 + $0x158] sm:$0xff]
  %v773 = vld [vmem:[%s2 + $0x160] sm:$0xff]
  %v774 = vld [vmem:[%s2 + $0x168] sm:$0xff]
  %v775 = vld [vmem:[%s2 + $0x170] sm:$0xff]
  %v776 = vld [vmem:[%s2 + $0x178] sm:$0xff]
  %v777 = vld [vmem:[%s2 + $0x180] sm:$0xff]
  %v778 = vld [vmem:[%s2 + $0x188] sm:$0xff]
  %v779 = vld [vmem:[%s2 + $0x190] sm:$0xff]
  %v780 = vld [vmem:[%s2 + $0x198] sm:$0xff]
  %v781 = vld [vmem:[%s2 + $0x1a0] sm:$0xff]
  %v782 = vld [vmem:[%s2 + $0x1a8] sm:$0xff]
  %v783 = vld [vmem:[%s2 + $0x1b0] sm:$0xff]
  %v784 = vld [vmem:[%s2 + $0x1b8] sm:$0xff]
  %v785 = vld [vmem:[%s2 + $0x1c0] sm:$0xff]
  %v786 = vld [vmem:[%s2 + $0x1c8] sm:$0xff]
  %v787 = vld [vmem:[%s2 + $0x1d0] sm:$0xff]
  %v788 = vld [vmem:[%s2 + $0x1d8] sm:$0xff]
  %v789 = vld [vmem:[%s2 + $0x1e0] sm:$0xff]
  %v790 = vld [vmem:[%s2 + $0x1e8] sm:$0xff]
  %v791 = vld [vmem:[%s2 + $0x1f0] sm:$0xff]
  %v792 = vld [vmem:[%s2 + $0x1f8] sm:$0xff]
  %v793 = vld [vmem:[%s2 + $0x200] sm:$0xff]
  %v794 = vld [vmem:[%s2 + $0x208] sm:$0xff]
  %v795 = vld [vmem:[%s2 + $0x210] sm:$0xff]
  %v796 = vld [vmem:[%s2 + $0x218] sm:$0xff]
  %v797 = vld [vmem:[%s2 + $0x220] sm:$0xff]
  %v798 = vld [vmem:[%s2 + $0x228] sm:$0xff]
  %v799 = vld [vmem:[%s2 + $0x230] sm:$0xff]
  %v800 = vld [vmem:[%s2 + $0x238] sm:$0xff]
  %v801 = vld [vmem:[%s2 + $0x240] sm:$0xff]
  %v802 = vld [vmem:[%s2 + $0x248] sm:$0xff]
  %v803 = vld [vmem:[%s2 + $0x250] sm:$0xff]
  %v804 = vld [vmem:[%s2 + $0x258] sm:$0xff]
  %v805 = vld [vmem:[%s2 + $0x260] sm:$0xff]
  %v806 = vld [vmem:[%s2 + $0x268] sm:$0xff]
  %v807 = vld [vmem:[%s2 + $0x270] sm:$0xff]
  %v808 = vld [vmem:[%s2 + $0x278] sm:$0xff]
  %v809 = vld [vmem:[%s2 + $0x280] sm:$0xff]
  %v810 = vld [vmem:[%s2 + $0x288] sm:$0xff]
  %v811 = vld [vmem:[%s2 + $0x290] sm:$0xff]
  %v812 = vld [vmem:[%s2 + $0x298] sm:$0xff]
  %v813 = vld [vmem:[%s2 + $0x2a0] sm:$0xff]
  %v814 = vld [vmem:[%s2 + $0x2a8] sm:$0xff]
  %v815 = vld [vmem:[%s2 + $0x2b0] sm:$0xff]
  %v816 = vld [vmem:[%s2 + $0x2b8] sm:$0xff]
  %v817 = vld [vmem:[%s2 + $0x2c0] sm:$0xff]
  %v818 = vld [vmem:[%s2 + $0x2c8] sm:$0xff]
  %v819 = vld [vmem:[%s2 + $0x2d0] sm:$0xff]
  %v820 = vld [vmem:[%s2 + $0x2d8] sm:$0xff]
  %v821 = vld [vmem:[%s2 + $0x2e0] sm:$0xff]
  %v822 = vld [vmem:[%s2 + $0x2e8] sm:$0xff]
  %v823 = vld [vmem:[%s2 + $0x2f0] sm:$0xff]
  %v824 = vld [vmem:[%s2 + $0x2f8] sm:$0xff]
  %v825 = vld [vmem:[%s2 + $0x300] sm:$0xff]
  %v826 = vld [vmem:[%s2 + $0x308] sm:$0xff]
  %v827 = vld [vmem:[%s2 + $0x310] sm:$0xff]
  %v828 = vld [vmem:[%s2 + $0x318] sm:$0xff]
  %v829 = vld [vmem:[%s2 + $0x320] sm:$0xff]
  %v830 = vld [vmem:[%s2 + $0x328] sm:$0xff]
  %v831 = vld [vmem:[%s2 + $0x330] sm:$0xff]
  %v832 = vld [vmem:[%s2 + $0x338] sm:$0xff]
  %v833 = vld [vmem:[%s2 + $0x340] sm:$0xff]
  %v834 = vld [vmem:[%s2 + $0x348] sm:$0xff]
  %v835 = vld [vmem:[%s2 + $0x350] sm:$0xff]
  %v836 = vld [vmem:[%s2 + $0x358] sm:$0xff]
  %v837 = vld [vmem:[%s2 + $0x360] sm:$0xff]
  %v838 = vld [vmem:[%s2 + $0x368] sm:$0xff]
  %v839 = vld [vmem:[%s2 + $0x370] sm:$0xff]
  %v840 = vld [vmem:[%s2 + $0x378] sm:$0xff]
  %v841 = vld [vmem:[%s2 + $0x380] sm:$0xff]
  %v842 = vld [vmem:[%s2 + $0x388] sm:$0xff]
  %v843 = vld [vmem:[%s2 + $0x390] sm:$0xff]
  %v844 = vld [vmem:[%s2 + $0x398] sm:$0xff]
  %v845 = vld [vmem:[%s2 + $0x3a0] sm:$0xff]
  %v846 = vld [vmem:[%s2 + $0x3a8] sm:$0xff]
  %v847 = vld [vmem:[%s2 + $0x3b0] sm:$0xff]
  %v848 = vld [vmem:[%s2 + $0x3b8] sm:$0xff]
  %v849 = vld [vmem:[%s2 + $0x3c0] sm:$0xff]
  %v850 = vld [vmem:[%s2 + $0x3c8] sm:$0xff]
  %v851 = vld [vmem:[%s2 + $0x3d0] sm:$0xff]
  %v852 = vld [vmem:[%s2 + $0x3d8] sm:$0xff]
  %v853 = vld [vmem:[%s2 + $0x3e0] sm:$0xff]
  %v854 = vld [vmem:[%s2 + $0x3e8] sm:$0xff]
  %v855 = vld [vmem:[%s2 + $0x3f0] sm:$0xff]
  %v856 = vld [vmem:[%s2 + $0x3f8] sm:$0xff]
  %857 = vmatpush.msra.mxu0 %v759
  %858 = vmatpush.msra.mxu0 %v757
  %859 = vmatpush.msra.mxu0 %v755
  %860 = vmatpush.msra.mxu0 %v753
  %861 = vmatpush.msra.mxu0 %v751
  %862 = vmatpush.msra.mxu0 %v749
  %863 = vmatpush.msra.mxu0 %v747
  %864 = vmatpush.msra.mxu0 %v745
  %865 = vmatpush.msra.mxu0 %v743
  %866 = vmatpush.msra.mxu0 %v741
  %867 = vmatpush.msra.mxu0 %v739
  %868 = vmatpush.msra.mxu0 %v737
  %869 = vmatpush.msra.mxu0 %v735
  %870 = vmatpush.msra.mxu0 %v733
  %871 = vmatpush.msra.mxu0 %v731
  %872 = vmatpush.msra.mxu0 %v729
  %873 = vmatmul.f32.gmra.mxu0 %v17
  %v874 = vpop.f32.mrf.mxu0
  %v875 = vadd.f32 0.0, %v874
  %876 = vmatmul.f32.gmra.mxu0 %v21
  %v877 = vpop.f32.mrf.mxu0
  %v878 = vadd.f32 0.0, %v877
  %879 = vmatmul.f32.gmra.mxu0 %v25
  %v880 = vpop.f32.mrf.mxu0
  %v881 = vadd.f32 0.0, %v880
  %882 = vmatmul.f32.gmra.mxu0 %v29
  %v883 = vpop.f32.mrf.mxu0
  %v884 = vadd.f32 0.0, %v883
  %885 = vmatmul.f32.gmra.mxu0 %v33
  %v886 = vpop.f32.mrf.mxu0
  %v887 = vadd.f32 0.0, %v886
  %888 = vmatmul.f32.gmra.mxu0 %v37
  %v889 = vpop.f32.mrf.mxu0
  %v890 = vadd.f32 0.0, %v889
  %891 = vmatmul.f32.gmra.mxu0 %v41
  %v892 = vpop.f32.mrf.mxu0
  %v893 = vadd.f32 0.0, %v892
  %894 = vmatmul.f32.gmra.mxu0 %v45
  %v895 = vpop.f32.mrf.mxu0
  %v896 = vadd.f32 0.0, %v895
  %897 = vmatmul.f32.gmra.mxu0 %v49
  %v898 = vpop.f32.mrf.mxu0
  %v899 = vadd.f32 0.0, %v898
  %900 = vmatmul.f32.gmra.mxu0 %v53
  %v901 = vpop.f32.mrf.mxu0
  %v902 = vadd.f32 0.0, %v901
  %903 = vmatmul.f32.gmra.mxu0 %v57
  %v904 = vpop.f32.mrf.mxu0
  %v905 = vadd.f32 0.0, %v904
  %906 = vmatmul.f32.gmra.mxu0 %v61
  %v907 = vpop.f32.mrf.mxu0
  %v908 = vadd.f32 0.0, %v907
  %909 = vmatmul.f32.gmra.mxu0 %v65
  %v910 = vpop.f32.mrf.mxu0
  %v911 = vadd.f32 0.0, %v910
  %912 = vmatmul.f32.gmra.mxu0 %v69
  %v913 = vpop.f32.mrf.mxu0
  %v914 = vadd.f32 0.0, %v913
  %915 = vmatmul.f32.gmra.mxu0 %v73
  %v916 = vpop.f32.mrf.mxu0
  %v917 = vadd.f32 0.0, %v916
  %918 = vmatmul.f32.gmra.mxu0 %v77
  %v919 = vpop.f32.mrf.mxu0
  %v920 = vadd.f32 0.0, %v919
  %921 = vdwg.mxu0
  %922 = vmatpush.msra.mxu0 %v791
  %923 = vmatpush.msra.mxu0 %v789
  %924 = vmatpush.msra.mxu0 %v787
  %925 = vmatpush.msra.mxu0 %v785
  %926 = vmatpush.msra.mxu0 %v783
  %927 = vmatpush.msra.mxu0 %v781
  %928 = vmatpush.msra.mxu0 %v779
  %929 = vmatpush.msra.mxu0 %v777
  %930 = vmatpush.msra.mxu0 %v775
  %931 = vmatpush.msra.mxu0 %v773
  %932 = vmatpush.msra.mxu0 %v771
  %933 = vmatpush.msra.mxu0 %v769
  %934 = vmatpush.msra.mxu0 %v767
  %935 = vmatpush.msra.mxu0 %v765
  %936 = vmatpush.msra.mxu0 %v763
  %937 = vmatpush.msra.mxu0 %v761
  %938 = vmatmul.f32.gmra.mxu0 %v18
  %v939 = vpop.f32.mrf.mxu0
  %v940 = vadd.f32 %v875, %v939
  %941 = vmatmul.f32.gmra.mxu0 %v22
  %v942 = vpop.f32.mrf.mxu0
  %v943 = vadd.f32 %v878, %v942
  %944 = vmatmul.f32.gmra.mxu0 %v26
  %v945 = vpop.f32.mrf.mxu0
  %v946 = vadd.f32 %v881, %v945
  %947 = vmatmul.f32.gmra.mxu0 %v30
  %v948 = vpop.f32.mrf.mxu0
  %v949 = vadd.f32 %v884, %v948
  %950 = vmatmul.f32.gmra.mxu0 %v34
  %v951 = vpop.f32.mrf.mxu0
  %v952 = vadd.f32 %v887, %v951
  %953 = vmatmul.f32.gmra.mxu0 %v38
  %v954 = vpop.f32.mrf.mxu0
  %v955 = vadd.f32 %v890, %v954
  %956 = vmatmul.f32.gmra.mxu0 %v42
  %v957 = vpop.f32.mrf.mxu0
  %v958 = vadd.f32 %v893, %v957
  %959 = vmatmul.f32.gmra.mxu0 %v46
  %v960 = vpop.f32.mrf.mxu0
  %v961 = vadd.f32 %v896, %v960
  %962 = vmatmul.f32.gmra.mxu0 %v50
  %v963 = vpop.f32.mrf.mxu0
  %v964 = vadd.f32 %v899, %v963
  %965 = vmatmul.f32.gmra.mxu0 %v54
  %v966 = vpop.f32.mrf.mxu0
  %v967 = vadd.f32 %v902, %v966
  %968 = vmatmul.f32.gmra.mxu0 %v58
  %v969 = vpop.f32.mrf.mxu0
  %v970 = vadd.f32 %v905, %v969
  %971 = vmatmul.f32.gmra.mxu0 %v62
  %v972 = vpop.f32.mrf.mxu0
  %v973 = vadd.f32 %v908, %v972
  %974 = vmatmul.f32.gmra.mxu0 %v66
  %v975 = vpop.f32.mrf.mxu0
  %v976 = vadd.f32 %v911, %v975
  %977 = vmatmul.f32.gmra.mxu0 %v70
  %v978 = vpop.f32.mrf.mxu0
  %v979 = vadd.f32 %v914, %v978
  %980 = vmatmul.f32.gmra.mxu0 %v74
  %v981 = vpop.f32.mrf.mxu0
  %v982 = vadd.f32 %v917, %v981
  %983 = vmatmul.f32.gmra.mxu0 %v78
  %v984 = vpop.f32.mrf.mxu0
  %v985 = vadd.f32 %v920, %v984
  %986 = vdwg.mxu0
  %987 = vmatpush.msra.mxu0 %v823
  %988 = vmatpush.msra.mxu0 %v821
  %989 = vmatpush.msra.mxu0 %v819
  %990 = vmatpush.msra.mxu0 %v817
  %991 = vmatpush.msra.mxu0 %v815
  %992 = vmatpush.msra.mxu0 %v813
  %993 = vmatpush.msra.mxu0 %v811
  %994 = vmatpush.msra.mxu0 %v809
  %995 = vmatpush.msra.mxu0 %v807
  %996 = vmatpush.msra.mxu0 %v805
  %997 = vmatpush.msra.mxu0 %v803
  %998 = vmatpush.msra.mxu0 %v801
  %999 = vmatpush.msra.mxu0 %v799
  %1000 = vmatpush.msra.mxu0 %v797
  %1001 = vmatpush.msra.mxu0 %v795
  %1002 = vmatpush.msra.mxu0 %v793
  %1003 = vmatmul.f32.gmra.mxu0 %v19
  %v1004 = vpop.f32.mrf.mxu0
  %v1005 = vadd.f32 %v940, %v1004
  %1006 = vmatmul.f32.gmra.mxu0 %v23
  %v1007 = vpop.f32.mrf.mxu0
  %v1008 = vadd.f32 %v943, %v1007
  %1009 = vmatmul.f32.gmra.mxu0 %v27
  %v1010 = vpop.f32.mrf.mxu0
  %v1011 = vadd.f32 %v946, %v1010
  %1012 = vmatmul.f32.gmra.mxu0 %v31
  %v1013 = vpop.f32.mrf.mxu0
  %v1014 = vadd.f32 %v949, %v1013
  %1015 = vmatmul.f32.gmra.mxu0 %v35
  %v1016 = vpop.f32.mrf.mxu0
  %v1017 = vadd.f32 %v952, %v1016
  %1018 = vmatmul.f32.gmra.mxu0 %v39
  %v1019 = vpop.f32.mrf.mxu0
  %v1020 = vadd.f32 %v955, %v1019
  %1021 = vmatmul.f32.gmra.mxu0 %v43
  %v1022 = vpop.f32.mrf.mxu0
  %v1023 = vadd.f32 %v958, %v1022
  %1024 = vmatmul.f32.gmra.mxu0 %v47
  %v1025 = vpop.f32.mrf.mxu0
  %v1026 = vadd.f32 %v961, %v1025
  %1027 = vmatmul.f32.gmra.mxu0 %v51
  %v1028 = vpop.f32.mrf.mxu0
  %v1029 = vadd.f32 %v964, %v1028
  %1030 = vmatmul.f32.gmra.mxu0 %v55
  %v1031 = vpop.f32.mrf.mxu0
  %v1032 = vadd.f32 %v967, %v1031
  %1033 = vmatmul.f32.gmra.mxu0 %v59
  %v1034 = vpop.f32.mrf.mxu0
  %v1035 = vadd.f32 %v970, %v1034
  %1036 = vmatmul.f32.gmra.mxu0 %v63
  %v1037 = vpop.f32.mrf.mxu0
  %v1038 = vadd.f32 %v973, %v1037
  %1039 = vmatmul.f32.gmra.mxu0 %v67
  %v1040 = vpop.f32.mrf.mxu0
  %v1041 = vadd.f32 %v976, %v1040
  %1042 = vmatmul.f32.gmra.mxu0 %v71
  %v1043 = vpop.f32.mrf.mxu0
  %v1044 = vadd.f32 %v979, %v1043
  %1045 = vmatmul.f32.gmra.mxu0 %v75
  %v1046 = vpop.f32.mrf.mxu0
  %v1047 = vadd.f32 %v982, %v1046
  %1048 = vmatmul.f32.gmra.mxu0 %v79
  %v1049 = vpop.f32.mrf.mxu0
  %v1050 = vadd.f32 %v985, %v1049
  %1051 = vdwg.mxu0
  %1052 = vmatpush.msra.mxu0 %v855
  %1053 = vmatpush.msra.mxu0 %v853
  %1054 = vmatpush.msra.mxu0 %v851
  %1055 = vmatpush.msra.mxu0 %v849
  %1056 = vmatpush.msra.mxu0 %v847
  %1057 = vmatpush.msra.mxu0 %v845
  %1058 = vmatpush.msra.mxu0 %v843
  %1059 = vmatpush.msra.mxu0 %v841
  %1060 = vmatpush.msra.mxu0 %v839
  %1061 = vmatpush.msra.mxu0 %v837
  %1062 = vmatpush.msra.mxu0 %v835
  %1063 = vmatpush.msra.mxu0 %v833
  %1064 = vmatpush.msra.mxu0 %v831
  %1065 = vmatpush.msra.mxu0 %v829
  %1066 = vmatpush.msra.mxu0 %v827
  %1067 = vmatpush.msra.mxu0 %v825
  %1068 = vmatmul.f32.gmra.mxu0 %v20
  %v1069 = vpop.f32.mrf.mxu0
  %v1070 = vadd.f32 %v1005, %v1069
  %1071 = vmatmul.f32.gmra.mxu0 %v24
  %v1072 = vpop.f32.mrf.mxu0
  %v1073 = vadd.f32 %v1008, %v1072
  %1074 = vmatmul.f32.gmra.mxu0 %v28
  %v1075 = vpop.f32.mrf.mxu0
  %v1076 = vadd.f32 %v1011, %v1075
  %1077 = vmatmul.f32.gmra.mxu0 %v32
  %v1078 = vpop.f32.mrf.mxu0
  %v1079 = vadd.f32 %v1014, %v1078
  %1080 = vmatmul.f32.gmra.mxu0 %v36
  %v1081 = vpop.f32.mrf.mxu0
  %v1082 = vadd.f32 %v1017, %v1081
  %1083 = vmatmul.f32.gmra.mxu0 %v40
  %v1084 = vpop.f32.mrf.mxu0
  %v1085 = vadd.f32 %v1020, %v1084
  %1086 = vmatmul.f32.gmra.mxu0 %v44
  %v1087 = vpop.f32.mrf.mxu0
  %v1088 = vadd.f32 %v1023, %v1087
  %1089 = vmatmul.f32.gmra.mxu0 %v48
  %v1090 = vpop.f32.mrf.mxu0
  %v1091 = vadd.f32 %v1026, %v1090
  %1092 = vmatmul.f32.gmra.mxu0 %v52
  %v1093 = vpop.f32.mrf.mxu0
  %v1094 = vadd.f32 %v1029, %v1093
  %1095 = vmatmul.f32.gmra.mxu0 %v56
  %v1096 = vpop.f32.mrf.mxu0
  %v1097 = vadd.f32 %v1032, %v1096
  %1098 = vmatmul.f32.gmra.mxu0 %v60
  %v1099 = vpop.f32.mrf.mxu0
  %v1100 = vadd.f32 %v1035, %v1099
  %1101 = vmatmul.f32.gmra.mxu0 %v64
  %v1102 = vpop.f32.mrf.mxu0
  %v1103 = vadd.f32 %v1038, %v1102
  %1104 = vmatmul.f32.gmra.mxu0 %v68
  %v1105 = vpop.f32.mrf.mxu0
  %v1106 = vadd.f32 %v1041, %v1105
  %1107 = vmatmul.f32.gmra.mxu0 %v72
  %v1108 = vpop.f32.mrf.mxu0
  %v1109 = vadd.f32 %v1044, %v1108
  %1110 = vmatmul.f32.gmra.mxu0 %v76
  %v1111 = vpop.f32.mrf.mxu0
  %v1112 = vadd.f32 %v1047, %v1111
  %1113 = vmatmul.f32.gmra.mxu0 %v80
  %v1114 = vpop.f32.mrf.mxu0
  %v1115 = vadd.f32 %v1050, %v1114
  %1116 = vdwg.mxu0
  %1117 = vmatpush.msra.mxu0 %v760
  %1118 = vmatpush.msra.mxu0 %v758
  %1119 = vmatpush.msra.mxu0 %v756
  %1120 = vmatpush.msra.mxu0 %v754
  %1121 = vmatpush.msra.mxu0 %v752
  %1122 = vmatpush.msra.mxu0 %v750
  %1123 = vmatpush.msra.mxu0 %v748
  %1124 = vmatpush.msra.mxu0 %v746
  %1125 = vmatpush.msra.mxu0 %v744
  %1126 = vmatpush.msra.mxu0 %v742
  %1127 = vmatpush.msra.mxu0 %v740
  %1128 = vmatpush.msra.mxu0 %v738
  %1129 = vmatpush.msra.mxu0 %v736
  %1130 = vmatpush.msra.mxu0 %v734
  %1131 = vmatpush.msra.mxu0 %v732
  %1132 = vmatpush.msra.mxu0 %v730
  %1133 = vmatmul.f32.gmra.mxu0 %v17
  %v1134 = vpop.f32.mrf.mxu0
  %v1135 = vadd.f32 0.0, %v1134
  %1136 = vmatmul.f32.gmra.mxu0 %v21
  %v1137 = vpop.f32.mrf.mxu0
  %v1138 = vadd.f32 0.0, %v1137
  %1139 = vmatmul.f32.gmra.mxu0 %v25
  %v1140 = vpop.f32.mrf.mxu0
  %v1141 = vadd.f32 0.0, %v1140
  %1142 = vmatmul.f32.gmra.mxu0 %v29
  %v1143 = vpop.f32.mrf.mxu0
  %v1144 = vadd.f32 0.0, %v1143
  %1145 = vmatmul.f32.gmra.mxu0 %v33
  %v1146 = vpop.f32.mrf.mxu0
  %v1147 = vadd.f32 0.0, %v1146
  %1148 = vmatmul.f32.gmra.mxu0 %v37
  %v1149 = vpop.f32.mrf.mxu0
  %v1150 = vadd.f32 0.0, %v1149
  %1151 = vmatmul.f32.gmra.mxu0 %v41
  %v1152 = vpop.f32.mrf.mxu0
  %v1153 = vadd.f32 0.0, %v1152
  %1154 = vmatmul.f32.gmra.mxu0 %v45
  %v1155 = vpop.f32.mrf.mxu0
  %v1156 = vadd.f32 0.0, %v1155
  %1157 = vmatmul.f32.gmra.mxu0 %v49
  %v1158 = vpop.f32.mrf.mxu0
  %v1159 = vadd.f32 0.0, %v1158
  %1160 = vmatmul.f32.gmra.mxu0 %v53
  %v1161 = vpop.f32.mrf.mxu0
  %v1162 = vadd.f32 0.0, %v1161
  %1163 = vmatmul.f32.gmra.mxu0 %v57
  %v1164 = vpop.f32.mrf.mxu0
  %v1165 = vadd.f32 0.0, %v1164
  %1166 = vmatmul.f32.gmra.mxu0 %v61
  %v1167 = vpop.f32.mrf.mxu0
  %v1168 = vadd.f32 0.0, %v1167
  %1169 = vmatmul.f32.gmra.mxu0 %v65
  %v1170 = vpop.f32.mrf.mxu0
  %v1171 = vadd.f32 0.0, %v1170
  %1172 = vmatmul.f32.gmra.mxu0 %v69
  %v1173 = vpop.f32.mrf.mxu0
  %v1174 = vadd.f32 0.0, %v1173
  %1175 = vmatmul.f32.gmra.mxu0 %v73
  %v1176 = vpop.f32.mrf.mxu0
  %v1177 = vadd.f32 0.0, %v1176
  %1178 = vmatmul.f32.gmra.mxu0 %v77
  %v1179 = vpop.f32.mrf.mxu0
  %v1180 = vadd.f32 0.0, %v1179
  %1181 = vdwg.mxu0
  %1182 = vmatpush.msra.mxu0 %v792
  %1183 = vmatpush.msra.mxu0 %v790
  %1184 = vmatpush.msra.mxu0 %v788
  %1185 = vmatpush.msra.mxu0 %v786
  %1186 = vmatpush.msra.mxu0 %v784
  %1187 = vmatpush.msra.mxu0 %v782
  %1188 = vmatpush.msra.mxu0 %v780
  %1189 = vmatpush.msra.mxu0 %v778
  %1190 = vmatpush.msra.mxu0 %v776
  %1191 = vmatpush.msra.mxu0 %v774
  %1192 = vmatpush.msra.mxu0 %v772
  %1193 = vmatpush.msra.mxu0 %v770
  %1194 = vmatpush.msra.mxu0 %v768
  %1195 = vmatpush.msra.mxu0 %v766
  %1196 = vmatpush.msra.mxu0 %v764
  %1197 = vmatpush.msra.mxu0 %v762
  %1198 = vmatmul.f32.gmra.mxu0 %v18
  %v1199 = vpop.f32.mrf.mxu0
  %v1200 = vadd.f32 %v1135, %v1199
  %1201 = vmatmul.f32.gmra.mxu0 %v22
  %v1202 = vpop.f32.mrf.mxu0
  %v1203 = vadd.f32 %v1138, %v1202
  %1204 = vmatmul.f32.gmra.mxu0 %v26
  %v1205 = vpop.f32.mrf.mxu0
  %v1206 = vadd.f32 %v1141, %v1205
  %1207 = vmatmul.f32.gmra.mxu0 %v30
  %v1208 = vpop.f32.mrf.mxu0
  %v1209 = vadd.f32 %v1144, %v1208
  %1210 = vmatmul.f32.gmra.mxu0 %v34
  %v1211 = vpop.f32.mrf.mxu0
  %v1212 = vadd.f32 %v1147, %v1211
  %1213 = vmatmul.f32.gmra.mxu0 %v38
  %v1214 = vpop.f32.mrf.mxu0
  %v1215 = vadd.f32 %v1150, %v1214
  %1216 = vmatmul.f32.gmra.mxu0 %v42
  %v1217 = vpop.f32.mrf.mxu0
  %v1218 = vadd.f32 %v1153, %v1217
  %1219 = vmatmul.f32.gmra.mxu0 %v46
  %v1220 = vpop.f32.mrf.mxu0
  %v1221 = vadd.f32 %v1156, %v1220
  %1222 = vmatmul.f32.gmra.mxu0 %v50
  %v1223 = vpop.f32.mrf.mxu0
  %v1224 = vadd.f32 %v1159, %v1223
  %1225 = vmatmul.f32.gmra.mxu0 %v54
  %v1226 = vpop.f32.mrf.mxu0
  %v1227 = vadd.f32 %v1162, %v1226
  %1228 = vmatmul.f32.gmra.mxu0 %v58
  %v1229 = vpop.f32.mrf.mxu0
  %v1230 = vadd.f32 %v1165, %v1229
  %1231 = vmatmul.f32.gmra.mxu0 %v62
  %v1232 = vpop.f32.mrf.mxu0
  %v1233 = vadd.f32 %v1168, %v1232
  %1234 = vmatmul.f32.gmra.mxu0 %v66
  %v1235 = vpop.f32.mrf.mxu0
  %v1236 = vadd.f32 %v1171, %v1235
  %1237 = vmatmul.f32.gmra.mxu0 %v70
  %v1238 = vpop.f32.mrf.mxu0
  %v1239 = vadd.f32 %v1174, %v1238
  %1240 = vmatmul.f32.gmra.mxu0 %v74
  %v1241 = vpop.f32.mrf.mxu0
  %v1242 = vadd.f32 %v1177, %v1241
  %1243 = vmatmul.f32.gmra.mxu0 %v78
  %v1244 = vpop.f32.mrf.mxu0
  %v1245 = vadd.f32 %v1180, %v1244
  %1246 = vdwg.mxu0
  %1247 = vmatpush.msra.mxu0 %v824
  %1248 = vmatpush.msra.mxu0 %v822
  %1249 = vmatpush.msra.mxu0 %v820
  %1250 = vmatpush.msra.mxu0 %v818
  %1251 = vmatpush.msra.mxu0 %v816
  %1252 = vmatpush.msra.mxu0 %v814
  %1253 = vmatpush.msra.mxu0 %v812
  %1254 = vmatpush.msra.mxu0 %v810
  %1255 = vmatpush.msra.mxu0 %v808
  %1256 = vmatpush.msra.mxu0 %v806
  %1257 = vmatpush.msra.mxu0 %v804
  %1258 = vmatpush.msra.mxu0 %v802
  %1259 = vmatpush.msra.mxu0 %v800
  %1260 = vmatpush.msra.mxu0 %v798
  %1261 = vmatpush.msra.mxu0 %v796
  %1262 = vmatpush.msra.mxu0 %v794
  %1263 = vmatmul.f32.gmra.mxu0 %v19
  %v1264 = vpop.f32.mrf.mxu0
  %v1265 = vadd.f32 %v1200, %v1264
  %1266 = vmatmul.f32.gmra.mxu0 %v23
  %v1267 = vpop.f32.mrf.mxu0
  %v1268 = vadd.f32 %v1203, %v1267
  %1269 = vmatmul.f32.gmra.mxu0 %v27
  %v1270 = vpop.f32.mrf.mxu0
  %v1271 = vadd.f32 %v1206, %v1270
  %1272 = vmatmul.f32.gmra.mxu0 %v31
  %v1273 = vpop.f32.mrf.mxu0
  %v1274 = vadd.f32 %v1209, %v1273
  %1275 = vmatmul.f32.gmra.mxu0 %v35
  %v1276 = vpop.f32.mrf.mxu0
  %v1277 = vadd.f32 %v1212, %v1276
  %1278 = vmatmul.f32.gmra.mxu0 %v39
  %v1279 = vpop.f32.mrf.mxu0
  %v1280 = vadd.f32 %v1215, %v1279
  %1281 = vmatmul.f32.gmra.mxu0 %v43
  %v1282 = vpop.f32.mrf.mxu0
  %v1283 = vadd.f32 %v1218, %v1282
  %1284 = vmatmul.f32.gmra.mxu0 %v47
  %v1285 = vpop.f32.mrf.mxu0
  %v1286 = vadd.f32 %v1221, %v1285
  %1287 = vmatmul.f32.gmra.mxu0 %v51
  %v1288 = vpop.f32.mrf.mxu0
  %v1289 = vadd.f32 %v1224, %v1288
  %1290 = vmatmul.f32.gmra.mxu0 %v55
  %v1291 = vpop.f32.mrf.mxu0
  %v1292 = vadd.f32 %v1227, %v1291
  %1293 = vmatmul.f32.gmra.mxu0 %v59
  %v1294 = vpop.f32.mrf.mxu0
  %v1295 = vadd.f32 %v1230, %v1294
  %1296 = vmatmul.f32.gmra.mxu0 %v63
  %v1297 = vpop.f32.mrf.mxu0
  %v1298 = vadd.f32 %v1233, %v1297
  %1299 = vmatmul.f32.gmra.mxu0 %v67
  %v1300 = vpop.f32.mrf.mxu0
  %v1301 = vadd.f32 %v1236, %v1300
  %1302 = vmatmul.f32.gmra.mxu0 %v71
  %v1303 = vpop.f32.mrf.mxu0
  %v1304 = vadd.f32 %v1239, %v1303
  %1305 = vmatmul.f32.gmra.mxu0 %v75
  %v1306 = vpop.f32.mrf.mxu0
  %v1307 = vadd.f32 %v1242, %v1306
  %1308 = vmatmul.f32.gmra.mxu0 %v79
  %v1309 = vpop.f32.mrf.mxu0
  %v1310 = vadd.f32 %v1245, %v1309
  %1311 = vdwg.mxu0
  %1312 = vmatpush.msra.mxu0 %v856
  %1313 = vmatpush.msra.mxu0 %v854
  %1314 = vmatpush.msra.mxu0 %v852
  %1315 = vmatpush.msra.mxu0 %v850
  %1316 = vmatpush.msra.mxu0 %v848
  %1317 = vmatpush.msra.mxu0 %v846
  %1318 = vmatpush.msra.mxu0 %v844
  %1319 = vmatpush.msra.mxu0 %v842
  %1320 = vmatpush.msra.mxu0 %v840
  %1321 = vmatpush.msra.mxu0 %v838
  %1322 = vmatpush.msra.mxu0 %v836
  %1323 = vmatpush.msra.mxu0 %v834
  %1324 = vmatpush.msra.mxu0 %v832
  %1325 = vmatpush.msra.mxu0 %v830
  %1326 = vmatpush.msra.mxu0 %v828
  %1327 = vmatpush.msra.mxu0 %v826
  %1328 = vmatmul.f32.gmra.mxu0 %v20
  %v1329 = vpop.f32.mrf.mxu0
  %v1330 = vadd.f32 %v1265, %v1329
  %1331 = vmatmul.f32.gmra.mxu0 %v24
  %v1332 = vpop.f32.mrf.mxu0
  %v1333 = vadd.f32 %v1268, %v1332
  %1334 = vmatmul.f32.gmra.mxu0 %v28
  %v1335 = vpop.f32.mrf.mxu0
  %v1336 = vadd.f32 %v1271, %v1335
  %1337 = vmatmul.f32.gmra.mxu0 %v32
  %v1338 = vpop.f32.mrf.mxu0
  %v1339 = vadd.f32 %v1274, %v1338
  %1340 = vmatmul.f32.gmra.mxu0 %v36
  %v1341 = vpop.f32.mrf.mxu0
  %v1342 = vadd.f32 %v1277, %v1341
  %1343 = vmatmul.f32.gmra.mxu0 %v40
  %v1344 = vpop.f32.mrf.mxu0
  %v1345 = vadd.f32 %v1280, %v1344
  %1346 = vmatmul.f32.gmra.mxu0 %v44
  %v1347 = vpop.f32.mrf.mxu0
  %v1348 = vadd.f32 %v1283, %v1347
  %1349 = vmatmul.f32.gmra.mxu0 %v48
  %v1350 = vpop.f32.mrf.mxu0
  %v1351 = vadd.f32 %v1286, %v1350
  %1352 = vmatmul.f32.gmra.mxu0 %v52
  %v1353 = vpop.f32.mrf.mxu0
  %v1354 = vadd.f32 %v1289, %v1353
  %1355 = vmatmul.f32.gmra.mxu0 %v56
  %v1356 = vpop.f32.mrf.mxu0
  %v1357 = vadd.f32 %v1292, %v1356
  %1358 = vmatmul.f32.gmra.mxu0 %v60
  %v1359 = vpop.f32.mrf.mxu0
  %v1360 = vadd.f32 %v1295, %v1359
  %1361 = vmatmul.f32.gmra.mxu0 %v64
  %v1362 = vpop.f32.mrf.mxu0
  %v1363 = vadd.f32 %v1298, %v1362
  %1364 = vmatmul.f32.gmra.mxu0 %v68
  %v1365 = vpop.f32.mrf.mxu0
  %v1366 = vadd.f32 %v1301, %v1365
  %1367 = vmatmul.f32.gmra.mxu0 %v72
  %v1368 = vpop.f32.mrf.mxu0
  %v1369 = vadd.f32 %v1304, %v1368
  %1370 = vmatmul.f32.gmra.mxu0 %v76
  %v1371 = vpop.f32.mrf.mxu0
  %v1372 = vadd.f32 %v1307, %v1371
  %1373 = vmatmul.f32.gmra.mxu0 %v80
  %v1374 = vpop.f32.mrf.mxu0
  %v1375 = vadd.f32 %v1310, %v1374
  %1376 = vdwg.mxu0
  %v1377 = vmul.f32 %v422, %v422
  %v1378 = vmul.f32 %v682, %v682
  %v1379 = vmul.f32 %v425, %v425
  %v1380 = vmul.f32 %v685, %v685
  %v1381 = vmul.f32 %v428, %v428
  %v1382 = vmul.f32 %v688, %v688
  %v1383 = vmul.f32 %v431, %v431
  %v1384 = vmul.f32 %v691, %v691
  %v1385 = vmul.f32 %v434, %v434
  %v1386 = vmul.f32 %v694, %v694
  %v1387 = vmul.f32 %v437, %v437
  %v1388 = vmul.f32 %v697, %v697
  %v1389 = vmul.f32 %v440, %v440
  %v1390 = vmul.f32 %v700, %v700
  %v1391 = vmul.f32 %v443, %v443
  %v1392 = vmul.f32 %v703, %v703
  %v1393 = vmul.f32 %v446, %v446
  %v1394 = vmul.f32 %v706, %v706
  %v1395 = vmul.f32 %v449, %v449
  %v1396 = vmul.f32 %v709, %v709
  %v1397 = vmul.f32 %v452, %v452
  %v1398 = vmul.f32 %v712, %v712
  %v1399 = vmul.f32 %v455, %v455
  %v1400 = vmul.f32 %v715, %v715
  %v1401 = vmul.f32 %v458, %v458
  %v1402 = vmul.f32 %v718, %v718
  %v1403 = vmul.f32 %v461, %v461
  %v1404 = vmul.f32 %v721, %v721
  %v1405 = vmul.f32 %v464, %v464
  %v1406 = vmul.f32 %v724, %v724
  %v1407 = vmul.f32 %v467, %v467
  %v1408 = vmul.f32 %v727, %v727
  %v1409 = vmul.f32 %v1070, %v1070
  %v1410 = vmul.f32 %v1330, %v1330
  %v1411 = vmul.f32 %v1073, %v1073
  %v1412 = vmul.f32 %v1333, %v1333
  %v1413 = vmul.f32 %v1076, %v1076
  %v1414 = vmul.f32 %v1336, %v1336
  %v1415 = vmul.f32 %v1079, %v1079
  %v1416 = vmul.f32 %v1339, %v1339
  %v1417 = vmul.f32 %v1082, %v1082
  %v1418 = vmul.f32 %v1342, %v1342
  %v1419 = vmul.f32 %v1085, %v1085
  %v1420 = vmul.f32 %v1345, %v1345
  %v1421 = vmul.f32 %v1088, %v1088
  %v1422 = vmul.f32 %v1348, %v1348
  %v1423 = vmul.f32 %v1091, %v1091
  %v1424 = vmul.f32 %v1351, %v1351
  %v1425 = vmul.f32 %v1094, %v1094
  %v1426 = vmul.f32 %v1354, %v1354
  %v1427 = vmul.f32 %v1097, %v1097
  %v1428 = vmul.f32 %v1357, %v1357
  %v1429 = vmul.f32 %v1100, %v1100
  %v1430 = vmul.f32 %v1360, %v1360
  %v1431 = vmul.f32 %v1103, %v1103
  %v1432 = vmul.f32 %v1363, %v1363
  %v1433 = vmul.f32 %v1106, %v1106
  %v1434 = vmul.f32 %v1366, %v1366
  %v1435 = vmul.f32 %v1109, %v1109
  %v1436 = vmul.f32 %v1369, %v1369
  %v1437 = vmul.f32 %v1112, %v1112
  %v1438 = vmul.f32 %v1372, %v1372
  %v1439 = vmul.f32 %v1115, %v1115
  %v1440 = vmul.f32 %v1375, %v1375
  %v1441 = vadd.f32 %v1377, %v1409
  %v1442 = vadd.f32 %v1378, %v1410
  %v1443 = vadd.f32 %v1379, %v1411
  %v1444 = vadd.f32 %v1380, %v1412
  %v1445 = vadd.f32 %v1381, %v1413
  %v1446 = vadd.f32 %v1382, %v1414
  %v1447 = vadd.f32 %v1383, %v1415
  %v1448 = vadd.f32 %v1384, %v1416
  %v1449 = vadd.f32 %v1385, %v1417
  %v1450 = vadd.f32 %v1386, %v1418
  %v1451 = vadd.f32 %v1387, %v1419
  %v1452 = vadd.f32 %v1388, %v1420
  %v1453 = vadd.f32 %v1389, %v1421
  %v1454 = vadd.f32 %v1390, %v1422
  %v1455 = vadd.f32 %v1391, %v1423
  %v1456 = vadd.f32 %v1392, %v1424
  %v1457 = vadd.f32 %v1393, %v1425
  %v1458 = vadd.f32 %v1394, %v1426
  %v1459 = vadd.f32 %v1395, %v1427
  %v1460 = vadd.f32 %v1396, %v1428
  %v1461 = vadd.f32 %v1397, %v1429
  %v1462 = vadd.f32 %v1398, %v1430
  %v1463 = vadd.f32 %v1399, %v1431
  %v1464 = vadd.f32 %v1400, %v1432
  %v1465 = vadd.f32 %v1401, %v1433
  %v1466 = vadd.f32 %v1402, %v1434
  %v1467 = vadd.f32 %v1403, %v1435
  %v1468 = vadd.f32 %v1404, %v1436
  %v1469 = vadd.f32 %v1405, %v1437
  %v1470 = vadd.f32 %v1406, %v1438
  %v1471 = vadd.f32 %v1407, %v1439
  %v1472 = vadd.f32 %v1408, %v1440
  %v1473 = vld [vmem:[%s3] sm:$0xff]
  %v1474 = vld [vmem:[%s3 + $0x8] sm:$0xff]
  %v1475 = vld [vmem:[%s3 + $0x10] sm:$0xff]
  %v1476 = vld [vmem:[%s3 + $0x18] sm:$0xff]
  %v1477 = vld [vmem:[%s3 + $0x20] sm:$0xff]
  %v1478 = vld [vmem:[%s3 + $0x28] sm:$0xff]
  %v1479 = vld [vmem:[%s3 + $0x30] sm:$0xff]
  %v1480 = vld [vmem:[%s3 + $0x38] sm:$0xff]
  %v1481 = vld [vmem:[%s3 + $0x40] sm:$0xff]
  %v1482 = vld [vmem:[%s3 + $0x48] sm:$0xff]
  %v1483 = vld [vmem:[%s3 + $0x50] sm:$0xff]
  %v1484 = vld [vmem:[%s3 + $0x58] sm:$0xff]
  %v1485 = vld [vmem:[%s3 + $0x60] sm:$0xff]
  %v1486 = vld [vmem:[%s3 + $0x68] sm:$0xff]
  %v1487 = vld [vmem:[%s3 + $0x70] sm:$0xff]
  %v1488 = vld [vmem:[%s3 + $0x78] sm:$0xff]
  %v1489 = vld [vmem:[%s3 + $0x80] sm:$0xff]
  %v1490 = vld [vmem:[%s3 + $0x88] sm:$0xff]
  %v1491 = vld [vmem:[%s3 + $0x90] sm:$0xff]
  %v1492 = vld [vmem:[%s3 + $0x98] sm:$0xff]
  %v1493 = vld [vmem:[%s3 + $0xa0] sm:$0xff]
  %v1494 = vld [vmem:[%s3 + $0xa8] sm:$0xff]
  %v1495 = vld [vmem:[%s3 + $0xb0] sm:$0xff]
  %v1496 = vld [vmem:[%s3 + $0xb8] sm:$0xff]
  %v1497 = vld [vmem:[%s3 + $0xc0] sm:$0xff]
  %v1498 = vld [vmem:[%s3 + $0xc8] sm:$0xff]
  %v1499 = vld [vmem:[%s3 + $0xd0] sm:$0xff]
  %v1500 = vld [vmem:[%s3 + $0xd8] sm:$0xff]
  %v1501 = vld [vmem:[%s3 + $0xe0] sm:$0xff]
  %v1502 = vld [vmem:[%s3 + $0xe8] sm:$0xff]
  %v1503 = vld [vmem:[%s3 + $0xf0] sm:$0xff]
  %v1504 = vld [vmem:[%s3 + $0xf8] sm:$0xff]
  %1505 = vmatpush.msra.mxu0 %v1488
  %1506 = vmatpush.msra.mxu0 %v1487
  %1507 = vmatpush.msra.mxu0 %v1486
  %1508 = vmatpush.msra.mxu0 %v1485
  %1509 = vmatpush.msra.mxu0 %v1484
  %1510 = vmatpush.msra.mxu0 %v1483
  %1511 = vmatpush.msra.mxu0 %v1482
  %1512 = vmatpush.msra.mxu0 %v1481
  %1513 = vmatpush.msra.mxu0 %v1480
  %1514 = vmatpush.msra.mxu0 %v1479
  %1515 = vmatpush.msra.mxu0 %v1478
  %1516 = vmatpush.msra.mxu0 %v1477
  %1517 = vmatpush.msra.mxu0 %v1476
  %1518 = vmatpush.msra.mxu0 %v1475
  %1519 = vmatpush.msra.mxu0 %v1474
  %1520 = vmatpush.msra.mxu0 %v1473
  %1521 = vmatmul.f32.gmra.mxu0 %v1441
  %v1522 = vpop.f32.mrf.mxu0
  %v1523 = vadd.f32 0.0, %v1522
  %1524 = vmatmul.f32.gmra.mxu0 %v1443
  %v1525 = vpop.f32.mrf.mxu0
  %v1526 = vadd.f32 0.0, %v1525
  %1527 = vmatmul.f32.gmra.mxu0 %v1445
  %v1528 = vpop.f32.mrf.mxu0
  %v1529 = vadd.f32 0.0, %v1528
  %1530 = vmatmul.f32.gmra.mxu0 %v1447
  %v1531 = vpop.f32.mrf.mxu0
  %v1532 = vadd.f32 0.0, %v1531
  %1533 = vmatmul.f32.gmra.mxu0 %v1449
  %v1534 = vpop.f32.mrf.mxu0
  %v1535 = vadd.f32 0.0, %v1534
  %1536 = vmatmul.f32.gmra.mxu0 %v1451
  %v1537 = vpop.f32.mrf.mxu0
  %v1538 = vadd.f32 0.0, %v1537
  %1539 = vmatmul.f32.gmra.mxu0 %v1453
  %v1540 = vpop.f32.mrf.mxu0
  %v1541 = vadd.f32 0.0, %v1540
  %1542 = vmatmul.f32.gmra.mxu0 %v1455
  %v1543 = vpop.f32.mrf.mxu0
  %v1544 = vadd.f32 0.0, %v1543
  %1545 = vmatmul.f32.gmra.mxu0 %v1457
  %v1546 = vpop.f32.mrf.mxu0
  %v1547 = vadd.f32 0.0, %v1546
  %1548 = vmatmul.f32.gmra.mxu0 %v1459
  %v1549 = vpop.f32.mrf.mxu0
  %v1550 = vadd.f32 0.0, %v1549
  %1551 = vmatmul.f32.gmra.mxu0 %v1461
  %v1552 = vpop.f32.mrf.mxu0
  %v1553 = vadd.f32 0.0, %v1552
  %1554 = vmatmul.f32.gmra.mxu0 %v1463
  %v1555 = vpop.f32.mrf.mxu0
  %v1556 = vadd.f32 0.0, %v1555
  %1557 = vmatmul.f32.gmra.mxu0 %v1465
  %v1558 = vpop.f32.mrf.mxu0
  %v1559 = vadd.f32 0.0, %v1558
  %1560 = vmatmul.f32.gmra.mxu0 %v1467
  %v1561 = vpop.f32.mrf.mxu0
  %v1562 = vadd.f32 0.0, %v1561
  %1563 = vmatmul.f32.gmra.mxu0 %v1469
  %v1564 = vpop.f32.mrf.mxu0
  %v1565 = vadd.f32 0.0, %v1564
  %1566 = vmatmul.f32.gmra.mxu0 %v1471
  %v1567 = vpop.f32.mrf.mxu0
  %v1568 = vadd.f32 0.0, %v1567
  %1569 = vdwg.mxu0
  %1570 = vmatpush.msra.mxu0 %v1504
  %1571 = vmatpush.msra.mxu0 %v1503
  %1572 = vmatpush.msra.mxu0 %v1502
  %1573 = vmatpush.msra.mxu0 %v1501
  %1574 = vmatpush.msra.mxu0 %v1500
  %1575 = vmatpush.msra.mxu0 %v1499
  %1576 = vmatpush.msra.mxu0 %v1498
  %1577 = vmatpush.msra.mxu0 %v1497
  %1578 = vmatpush.msra.mxu0 %v1496
  %1579 = vmatpush.msra.mxu0 %v1495
  %1580 = vmatpush.msra.mxu0 %v1494
  %1581 = vmatpush.msra.mxu0 %v1493
  %1582 = vmatpush.msra.mxu0 %v1492
  %1583 = vmatpush.msra.mxu0 %v1491
  %1584 = vmatpush.msra.mxu0 %v1490
  %1585 = vmatpush.msra.mxu0 %v1489
  %1586 = vmatmul.f32.gmra.mxu0 %v1442
  %v1587 = vpop.f32.mrf.mxu0
  %v1588 = vadd.f32 %v1523, %v1587
  %1589 = vmatmul.f32.gmra.mxu0 %v1444
  %v1590 = vpop.f32.mrf.mxu0
  %v1591 = vadd.f32 %v1526, %v1590
  %1592 = vmatmul.f32.gmra.mxu0 %v1446
  %v1593 = vpop.f32.mrf.mxu0
  %v1594 = vadd.f32 %v1529, %v1593
  %1595 = vmatmul.f32.gmra.mxu0 %v1448
  %v1596 = vpop.f32.mrf.mxu0
  %v1597 = vadd.f32 %v1532, %v1596
  %1598 = vmatmul.f32.gmra.mxu0 %v1450
  %v1599 = vpop.f32.mrf.mxu0
  %v1600 = vadd.f32 %v1535, %v1599
  %1601 = vmatmul.f32.gmra.mxu0 %v1452
  %v1602 = vpop.f32.mrf.mxu0
  %v1603 = vadd.f32 %v1538, %v1602
  %1604 = vmatmul.f32.gmra.mxu0 %v1454
  %v1605 = vpop.f32.mrf.mxu0
  %v1606 = vadd.f32 %v1541, %v1605
  %1607 = vmatmul.f32.gmra.mxu0 %v1456
  %v1608 = vpop.f32.mrf.mxu0
  %v1609 = vadd.f32 %v1544, %v1608
  %1610 = vmatmul.f32.gmra.mxu0 %v1458
  %v1611 = vpop.f32.mrf.mxu0
  %v1612 = vadd.f32 %v1547, %v1611
  %1613 = vmatmul.f32.gmra.mxu0 %v1460
  %v1614 = vpop.f32.mrf.mxu0
  %v1615 = vadd.f32 %v1550, %v1614
  %1616 = vmatmul.f32.gmra.mxu0 %v1462
  %v1617 = vpop.f32.mrf.mxu0
  %v1618 = vadd.f32 %v1553, %v1617
  %1619 = vmatmul.f32.gmra.mxu0 %v1464
  %v1620 = vpop.f32.mrf.mxu0
  %v1621 = vadd.f32 %v1556, %v1620
  %1622 = vmatmul.f32.gmra.mxu0 %v1466
  %v1623 = vpop.f32.mrf.mxu0
  %v1624 = vadd.f32 %v1559, %v1623
  %1625 = vmatmul.f32.gmra.mxu0 %v1468
  %v1626 = vpop.f32.mrf.mxu0
  %v1627 = vadd.f32 %v1562, %v1626
  %1628 = vmatmul.f32.gmra.mxu0 %v1470
  %v1629 = vpop.f32.mrf.mxu0
  %v1630 = vadd.f32 %v1565, %v1629
  %1631 = vmatmul.f32.gmra.mxu0 %v1472
  %v1632 = vpop.f32.mrf.mxu0
  %v1633 = vadd.f32 %v1568, %v1632
  %1634 = vdwg.mxu0
  %v1635 = vmax.f32 %v1588, 1e-10
  %v1636 = vmax.f32 %v1591, 1e-10
  %v1637 = vmax.f32 %v1594, 1e-10
  %v1638 = vmax.f32 %v1597, 1e-10
  %v1639 = vmax.f32 %v1600, 1e-10
  %v1640 = vmax.f32 %v1603, 1e-10
  %v1641 = vmax.f32 %v1606, 1e-10
  %v1642 = vmax.f32 %v1609, 1e-10
  %v1643 = vmax.f32 %v1612, 1e-10
  %v1644 = vmax.f32 %v1615, 1e-10
  %v1645 = vmax.f32 %v1618, 1e-10
  %v1646 = vmax.f32 %v1621, 1e-10
  %v1647 = vmax.f32 %v1624, 1e-10
  %v1648 = vmax.f32 %v1627, 1e-10
  %v1649 = vmax.f32 %v1630, 1e-10
  %v1650 = vmax.f32 %v1633, 1e-10
  %v1651 = vlog2.pop %v1635
  %v1652 = vmul.f32 %v1651, 0.6931472
  %v1653 = vlog2.pop %v1636
  %v1654 = vmul.f32 %v1653, 0.6931472
  %v1655 = vlog2.pop %v1637
  %v1656 = vmul.f32 %v1655, 0.6931472
  %v1657 = vlog2.pop %v1638
  %v1658 = vmul.f32 %v1657, 0.6931472
  %v1659 = vlog2.pop %v1639
  %v1660 = vmul.f32 %v1659, 0.6931472
  %v1661 = vlog2.pop %v1640
  %v1662 = vmul.f32 %v1661, 0.6931472
  %v1663 = vlog2.pop %v1641
  %v1664 = vmul.f32 %v1663, 0.6931472
  %v1665 = vlog2.pop %v1642
  %v1666 = vmul.f32 %v1665, 0.6931472
  %v1667 = vlog2.pop %v1643
  %v1668 = vmul.f32 %v1667, 0.6931472
  %v1669 = vlog2.pop %v1644
  %v1670 = vmul.f32 %v1669, 0.6931472
  %v1671 = vlog2.pop %v1645
  %v1672 = vmul.f32 %v1671, 0.6931472
  %v1673 = vlog2.pop %v1646
  %v1674 = vmul.f32 %v1673, 0.6931472
  %v1675 = vlog2.pop %v1647
  %v1676 = vmul.f32 %v1675, 0.6931472
  %v1677 = vlog2.pop %v1648
  %v1678 = vmul.f32 %v1677, 0.6931472
  %v1679 = vlog2.pop %v1649
  %v1680 = vmul.f32 %v1679, 0.6931472
  %v1681 = vlog2.pop %v1650
  %v1682 = vmul.f32 %v1681, 0.6931472
  %v1683 = vmul.f32 %v1652, 0.4342945
  %v1684 = vmul.f32 %v1654, 0.4342945
  %v1685 = vmul.f32 %v1656, 0.4342945
  %v1686 = vmul.f32 %v1658, 0.4342945
  %v1687 = vmul.f32 %v1660, 0.4342945
  %v1688 = vmul.f32 %v1662, 0.4342945
  %v1689 = vmul.f32 %v1664, 0.4342945
  %v1690 = vmul.f32 %v1666, 0.4342945
  %v1691 = vmul.f32 %v1668, 0.4342945
  %v1692 = vmul.f32 %v1670, 0.4342945
  %v1693 = vmul.f32 %v1672, 0.4342945
  %v1694 = vmul.f32 %v1674, 0.4342945
  %v1695 = vmul.f32 %v1676, 0.4342945
  %v1696 = vmul.f32 %v1678, 0.4342945
  %v1697 = vmul.f32 %v1680, 0.4342945
  %v1698 = vmul.f32 %v1682, 0.4342945
  %v1699 = vmul.f32 %v1683, 10.0
  %v1700 = vmul.f32 %v1684, 10.0
  %v1701 = vmul.f32 %v1685, 10.0
  %v1702 = vmul.f32 %v1686, 10.0
  %v1703 = vmul.f32 %v1687, 10.0
  %v1704 = vmul.f32 %v1688, 10.0
  %v1705 = vmul.f32 %v1689, 10.0
  %v1706 = vmul.f32 %v1690, 10.0
  %v1707 = vmul.f32 %v1691, 10.0
  %v1708 = vmul.f32 %v1692, 10.0
  %v1709 = vmul.f32 %v1693, 10.0
  %v1710 = vmul.f32 %v1694, 10.0
  %v1711 = vmul.f32 %v1695, 10.0
  %v1712 = vmul.f32 %v1696, 10.0
  %v1713 = vmul.f32 %v1697, 10.0
  %v1714 = vmul.f32 %v1698, 10.0
  %1715 = vst [vmem:[%s4] sm:$0xff] %v1699
  %1716 = vst [vmem:[%s4 + $0x8] sm:$0xff] %v1700
  %1717 = vst [vmem:[%s4 + $0x10] sm:$0xff] %v1701
  %1718 = vst [vmem:[%s4 + $0x18] sm:$0xff] %v1702
  %1719 = vst [vmem:[%s4 + $0x20] sm:$0xff] %v1703
  %1720 = vst [vmem:[%s4 + $0x28] sm:$0xff] %v1704
  %1721 = vst [vmem:[%s4 + $0x30] sm:$0xff] %v1705
  %1722 = vst [vmem:[%s4 + $0x38] sm:$0xff] %v1706
  %1723 = vst [vmem:[%s4 + $0x40] sm:$0xff] %v1707
  %1724 = vst [vmem:[%s4 + $0x48] sm:$0xff] %v1708
  %1725 = vst [vmem:[%s4 + $0x50] sm:$0xff] %v1709
  %1726 = vst [vmem:[%s4 + $0x58] sm:$0xff] %v1710
  %1727 = vst [vmem:[%s4 + $0x60] sm:$0xff] %v1711
  %1728 = vst [vmem:[%s4 + $0x68] sm:$0xff] %v1712
  %1729 = vst [vmem:[%s4 + $0x70] sm:$0xff] %v1713
  %1730 = vst [vmem:[%s4 + $0x78] sm:$0xff] %v1714
  // Predicated region
  $region18: #{fbank.1} parent=0 // pred_check
    _
  $region19: #{fbank.1} parent=0 // pred_check_branch
    %1732 = sbr.rel (0) target = $region21
  $region20: #{fbank.1} parent=0 // pred_region
    _
  $region21: #{fbank.1} parent=0 // pred_fallthru
    _
  // Predicated region
  $region22: #{fbank.1} parent=0 // pred_check
    _
  $region23: #{fbank.1} parent=0 // pred_check_branch
    %1734 = sbr.rel (0) target = $region25
  $region24: #{fbank.1} parent=0 // pred_region
    _
  $region25: #{fbank.1} parent=0 // pred_fallthru
    _

</llo_original>
